<compile_context>
chip_gen: v7x
topology: tpu7x:2x2x1
jax: 0.10.0
libtpu: 0.0.40
codegen_flags: <defaults>
</compile_context>

<pallas_src>
import jax
import jax.numpy as jnp
from jax.experimental import pallas as pl
from jax.experimental.pallas import tpu as pltpu


def gcnmid_kernel(x_ref, a_ref, mask_ref,
                  w1_ref, w2_ref, w3_ref, w4_ref, w5_ref,
                  b2_ref, b4_ref,
                  s1_ref, t1_ref, s2_ref, t2_ref, s3_ref, t3_ref,
                  wh_ref, bh_ref,
                  out_ref):
    a = a_ref[...]                                   # bf16 [N, N]

    def gcn(h_f32, w_ref):
        # A_hat @ H @ W with bf16 operands, f32 accumulation on the MXU.
        agg = jnp.dot(a, h_f32.astype(jnp.bfloat16),
                      preferred_element_type=jnp.float32)
        return jnp.dot(agg.astype(jnp.bfloat16), w_ref[...],
                       preferred_element_type=jnp.float32)

    def gelu(h):
        # exact (erf-based) GELU in f32, matching torch.nn.GELU(approximate='none')
        return 0.5 * h * (1.0 + jax.lax.erf(h * 0.7071067811865476))

    h = x_ref[...]                                   # f32 [N, 2]

    # layer 1: GCN -> (conv-bias + BN folded into scale/shift) -> GELU
    h = gelu(gcn(h, w1_ref) * s1_ref[...] + t1_ref[...])
    # layer 2: GCN -> bias -> GELU      (F.dropout(p=0.2) identity in eval)
    h = gelu(gcn(h, w2_ref) + b2_ref[...])
    # layer 3: GCN -> folded BN -> GELU
    h = gelu(gcn(h, w3_ref) * s2_ref[...] + t2_ref[...])
    # layer 4: GCN -> bias -> GELU
    h = gelu(gcn(h, w4_ref) + b4_ref[...])
    # layer 5: GCN -> folded BN -> GELU
    h = gelu(gcn(h, w5_ref) * s3_ref[...] + t3_ref[...])

    # global_max_pool: one vectorized masked max over nodes for all graphs.
    neg = jnp.float32(-1e30)
    mask = mask_ref[...]                             # f32 [N, G]
    pooled = jnp.max(
        jnp.where(mask[:, :, None] > 0.0, h[:, None, :], neg),
        axis=0)                                      # [G, 256]

    # fused head: lin(lin1(x)) collapsed offline to a single 256->2 affine
    # (dropout(p=0.3) identity in eval, no nonlinearity between the Linears).
    out_ref[...] = jnp.dot(pooled, wh_ref[...],
                           preferred_element_type=jnp.float32) + bh_ref[...]


def gcnmid_forward(x, ei, batch, params, n_graphs):
    """Plain-JAX glue: dense normalized adjacency, pooling mask, folded params."""
    n = x.shape[0]
    (w1, b1, w2, b2, w3, b3, w4, b4, w5, b5,
     g1, be1, m1, v1, g2, be2, m2, v2, g3, be3, m3, v3,
     lw1, lb1, lw2, lb2) = params

    # GCNConv gcn_norm: add self loops, A_hat[dst, src] = d^-1/2[dst] d^-1/2[src]
    loops = jnp.arange(n, dtype=ei.dtype)
    src = jnp.concatenate([ei[0], loops])
    dst = jnp.concatenate([ei[1], loops])
    adj = jnp.zeros((n, n), jnp.float32).at[dst, src].add(1.0)
    deg = jnp.sum(adj, axis=1)
    dinv = jnp.where(deg > 0, 1.0 / jnp.sqrt(deg), 0.0)
    a_hat = (dinv[:, None] * adj * dinv[None, :]).astype(jnp.bfloat16)

    mask = (batch[:, None] == jnp.arange(n_graphs, dtype=batch.dtype)[None, :]
            ).astype(jnp.float32)

    # Fold BatchNorm (eval) + preceding GCN bias into per-channel scale/shift:
    #   scale = gamma * rsqrt(var + eps);  shift = beta + (b_conv - mean) * scale
    eps = 1e-5

    def fold(gamma, beta, mean, var, b_conv):
        scale = gamma * jax.lax.rsqrt(var + eps)
        shift = beta + (b_conv - mean) * scale
        return scale, shift

    s1, t1 = fold(g1, be1, m1, v1, b1)
    s2, t2 = fold(g2, be2, m2, v2, b3)
    s3, t3 = fold(g3, be3, m3, v3, b5)

    # Fuse the two head Linears offline (exact: no activation between them).
    wh = jnp.dot(lw1, lw2)            # [256, 2]
    bh = jnp.dot(lb1, lw2) + lb2      # [1, 2]

    bf = lambda w: w.astype(jnp.bfloat16)
    args = [x.astype(jnp.float32), a_hat, mask,
            bf(w1), bf(w2), bf(w3), bf(w4), bf(w5),
            b2, b4,
            s1, t1, s2, t2, s3, t3,
            wh, bh]

    return pl.pallas_call(
        gcnmid_kernel,
        out_shape=jax.ShapeDtypeStruct((n_graphs, 2), jnp.float32),
        in_specs=[pl.BlockSpec(memory_space=pltpu.MemorySpace.VMEM)] * len(args),
        out_specs=pl.BlockSpec(memory_space=pltpu.MemorySpace.VMEM),
        compiler_params=pltpu.CompilerParams(vmem_limit_bytes=32 * 1024 * 1024),
    )(*args)


def _glorot(key, shape):
    fan_in, fan_out = shape
    lim = (6.0 / (fan_in + fan_out)) ** 0.5
    return jax.random.uniform(key, shape, jnp.float32, -lim, lim)


def make_params(key):
    """Deterministic synthetic parameters (shapes from GCNMid.__init__)."""
    keys = jax.random.split(key, 10)
    params = []
    # GCNConv weights [in, out] + bias (1, out)
    gcn_dims = [(2, 64), (64, 64), (64, 128), (128, 256), (256, 256)]
    for i, (fi, fo) in enumerate(gcn_dims):
        params.append(_glorot(keys[i], (fi, fo)))
        params.append(jnp.zeros((1, fo), jnp.float32))
    # BatchNorm(64), BatchNorm(128), BatchNorm(256): gamma, beta, mean, var
    for c in (64, 128, 256):
        params.append(jnp.ones((1, c), jnp.float32))
        params.append(jnp.zeros((1, c), jnp.float32))
        params.append(jnp.zeros((1, c), jnp.float32))
        params.append(jnp.ones((1, c), jnp.float32))
    # Linear(256, 10) and Linear(10, 2), passed pre-transposed as [in, out]
    lim1 = 1.0 / (256.0 ** 0.5)
    lim2 = 1.0 / (10.0 ** 0.5)
    params.append(jax.random.uniform(keys[5], (256, 10), jnp.float32, -lim1, lim1))
    params.append(jax.random.uniform(keys[6], (1, 10), jnp.float32, -lim1, lim1))
    params.append(jax.random.uniform(keys[7], (10, 2), jnp.float32, -lim2, lim2))
    params.append(jax.random.uniform(keys[8], (1, 2), jnp.float32, -lim2, lim2))
    return params


if __name__ == "__main__":
    key = jax.random.PRNGKey(0)
    k_x, k_e1, k_e2, k_p = jax.random.split(key, 4)

    N, E, G = 16, 32, 2                          # nodes, edges, graphs
    x = jax.random.normal(k_x, (N, 2), jnp.float32)
    src = jax.random.randint(k_e1, (E,), 0, N, jnp.int32)
    dst = jax.random.randint(k_e2, (E,), 0, N, jnp.int32)
    ei = jnp.stack([src, dst])                   # [2, E]
    batch = jnp.concatenate([jnp.zeros(N // 2, jnp.int32),
                             jnp.ones(N - N // 2, jnp.int32)])  # [N]

    params = make_params(k_p)
    out = gcnmid_forward(x, ei, batch, params, G)
    jax.block_until_ready(out)
    assert out.shape == (G, 2)
    print("KERNEL_OK")
</pallas_src>

<mosaic_0001>
module attributes {stable_mosaic.version = 11 : i64} {
  func.func @gcnmid_kernel(%arg0: memref<16x2xf32, #tpu.memory_space<vmem>>, %arg1: memref<16x16xbf16, #tpu.memory_space<vmem>>, %arg2: memref<16x2xf32, #tpu.memory_space<vmem>>, %arg3: memref<2x64xbf16, #tpu.memory_space<vmem>>, %arg4: memref<64x64xbf16, #tpu.memory_space<vmem>>, %arg5: memref<64x128xbf16, #tpu.memory_space<vmem>>, %arg6: memref<128x256xbf16, #tpu.memory_space<vmem>>, %arg7: memref<256x256xbf16, #tpu.memory_space<vmem>>, %arg8: memref<1x64xf32, #tpu.memory_space<vmem>>, %arg9: memref<1x256xf32, #tpu.memory_space<vmem>>, %arg10: memref<1x64xf32, #tpu.memory_space<vmem>>, %arg11: memref<1x64xf32, #tpu.memory_space<vmem>>, %arg12: memref<1x128xf32, #tpu.memory_space<vmem>>, %arg13: memref<1x128xf32, #tpu.memory_space<vmem>>, %arg14: memref<1x256xf32, #tpu.memory_space<vmem>>, %arg15: memref<1x256xf32, #tpu.memory_space<vmem>>, %arg16: memref<256x2xf32, #tpu.memory_space<vmem>>, %arg17: memref<1x2xf32, #tpu.memory_space<vmem>>, %arg18: memref<2x2xf32, #tpu.memory_space<vmem>>) attributes {dimension_semantics = [], scalar_prefetch = 0 : i64, scratch_operands = 0 : i64, tpu.core_type = #tpu.core_type<tc>} {
    %c0 = arith.constant 0 : index
    %c0_0 = arith.constant 0 : index
    %0 = vector.load %arg1[%c0, %c0_0] : memref<16x16xbf16, #tpu.memory_space<vmem>>, vector<16x16xbf16>
    %c0_1 = arith.constant 0 : index
    %c0_2 = arith.constant 0 : index
    %1 = vector.load %arg0[%c0_1, %c0_2] : memref<16x2xf32, #tpu.memory_space<vmem>>, vector<16x2xf32>
    %2 = arith.truncf %1 : vector<16x2xf32> to vector<16x2xbf16>
    %cst = arith.constant dense<0.000000e+00> : vector<16x2xf32>
    %3 = tpu.matmul %0, %2, %cst {dimension_numbers = #tpu.dot_dimension_numbers<[1], [0], [0], [1], [0, 0, 1, 1], [], []>} : vector<16x16xbf16>, vector<16x2xbf16>, vector<16x2xf32> -> vector<16x2xf32>
    %4 = arith.truncf %3 : vector<16x2xf32> to vector<16x2xbf16>
    %c0_3 = arith.constant 0 : index
    %c0_4 = arith.constant 0 : index
    %5 = vector.load %arg3[%c0_3, %c0_4] : memref<2x64xbf16, #tpu.memory_space<vmem>>, vector<2x64xbf16>
    %cst_5 = arith.constant dense<0.000000e+00> : vector<16x64xf32>
    %6 = tpu.matmul %4, %5, %cst_5 {dimension_numbers = #tpu.dot_dimension_numbers<[1], [0], [0], [1], [0, 0, 1, 1], [], []>} : vector<16x2xbf16>, vector<2x64xbf16>, vector<16x64xf32> -> vector<16x64xf32>
    %c0_6 = arith.constant 0 : index
    %c0_7 = arith.constant 0 : index
    %7 = vector.load %arg10[%c0_6, %c0_7] : memref<1x64xf32, #tpu.memory_space<vmem>>, vector<1x64xf32>
    %8 = vector.broadcast %7 : vector<1x64xf32> to vector<16x64xf32>
    %9 = arith.mulf %6, %8 : vector<16x64xf32>
    %c0_8 = arith.constant 0 : index
    %c0_9 = arith.constant 0 : index
    %10 = vector.load %arg11[%c0_8, %c0_9] : memref<1x64xf32, #tpu.memory_space<vmem>>, vector<1x64xf32>
    %11 = vector.broadcast %10 : vector<1x64xf32> to vector<16x64xf32>
    %12 = arith.addf %9, %11 : vector<16x64xf32>
    %cst_10 = arith.constant 5.000000e-01 : f32
    %13 = vector.broadcast %cst_10 : f32 to vector<16x64xf32>
    %14 = arith.mulf %13, %12 : vector<16x64xf32>
    %cst_11 = arith.constant 0.707106769 : f32
    %15 = vector.broadcast %cst_11 : f32 to vector<16x64xf32>
    %16 = arith.mulf %12, %15 : vector<16x64xf32>
    %17 = math.erf %16 : vector<16x64xf32>
    %cst_12 = arith.constant 1.000000e+00 : f32
    %18 = vector.broadcast %cst_12 : f32 to vector<16x64xf32>
    %19 = arith.addf %18, %17 : vector<16x64xf32>
    %20 = arith.mulf %14, %19 : vector<16x64xf32>
    %21 = arith.truncf %20 : vector<16x64xf32> to vector<16x64xbf16>
    %cst_13 = arith.constant dense<0.000000e+00> : vector<16x64xf32>
    %22 = tpu.matmul %0, %21, %cst_13 {dimension_numbers = #tpu.dot_dimension_numbers<[1], [0], [0], [1], [0, 0, 1, 1], [], []>} : vector<16x16xbf16>, vector<16x64xbf16>, vector<16x64xf32> -> vector<16x64xf32>
    %23 = arith.truncf %22 : vector<16x64xf32> to vector<16x64xbf16>
    %c0_14 = arith.constant 0 : index
    %c0_15 = arith.constant 0 : index
    %24 = vector.load %arg4[%c0_14, %c0_15] : memref<64x64xbf16, #tpu.memory_space<vmem>>, vector<64x64xbf16>
    %cst_16 = arith.constant dense<0.000000e+00> : vector<16x64xf32>
    %25 = tpu.matmul %23, %24, %cst_16 {dimension_numbers = #tpu.dot_dimension_numbers<[1], [0], [0], [1], [0, 0, 1, 1], [], []>} : vector<16x64xbf16>, vector<64x64xbf16>, vector<16x64xf32> -> vector<16x64xf32>
    %c0_17 = arith.constant 0 : index
    %c0_18 = arith.constant 0 : index
    %26 = vector.load %arg8[%c0_17, %c0_18] : memref<1x64xf32, #tpu.memory_space<vmem>>, vector<1x64xf32>
    %27 = vector.broadcast %26 : vector<1x64xf32> to vector<16x64xf32>
    %28 = arith.addf %25, %27 : vector<16x64xf32>
    %cst_19 = arith.constant 5.000000e-01 : f32
    %29 = vector.broadcast %cst_19 : f32 to vector<16x64xf32>
    %30 = arith.mulf %29, %28 : vector<16x64xf32>
    %cst_20 = arith.constant 0.707106769 : f32
    %31 = vector.broadcast %cst_20 : f32 to vector<16x64xf32>
    %32 = arith.mulf %28, %31 : vector<16x64xf32>
    %33 = math.erf %32 : vector<16x64xf32>
    %cst_21 = arith.constant 1.000000e+00 : f32
    %34 = vector.broadcast %cst_21 : f32 to vector<16x64xf32>
    %35 = arith.addf %34, %33 : vector<16x64xf32>
    %36 = arith.mulf %30, %35 : vector<16x64xf32>
    %37 = arith.truncf %36 : vector<16x64xf32> to vector<16x64xbf16>
    %cst_22 = arith.constant dense<0.000000e+00> : vector<16x64xf32>
    %38 = tpu.matmul %0, %37, %cst_22 {dimension_numbers = #tpu.dot_dimension_numbers<[1], [0], [0], [1], [0, 0, 1, 1], [], []>} : vector<16x16xbf16>, vector<16x64xbf16>, vector<16x64xf32> -> vector<16x64xf32>
    %39 = arith.truncf %38 : vector<16x64xf32> to vector<16x64xbf16>
    %c0_23 = arith.constant 0 : index
    %c0_24 = arith.constant 0 : index
    %40 = vector.load %arg5[%c0_23, %c0_24] : memref<64x128xbf16, #tpu.memory_space<vmem>>, vector<64x128xbf16>
    %cst_25 = arith.constant dense<0.000000e+00> : vector<16x128xf32>
    %41 = tpu.matmul %39, %40, %cst_25 {dimension_numbers = #tpu.dot_dimension_numbers<[1], [0], [0], [1], [0, 0, 1, 1], [], []>} : vector<16x64xbf16>, vector<64x128xbf16>, vector<16x128xf32> -> vector<16x128xf32>
    %c0_26 = arith.constant 0 : index
    %c0_27 = arith.constant 0 : index
    %42 = vector.load %arg12[%c0_26, %c0_27] : memref<1x128xf32, #tpu.memory_space<vmem>>, vector<1x128xf32>
    %43 = vector.broadcast %42 : vector<1x128xf32> to vector<16x128xf32>
    %44 = arith.mulf %41, %43 : vector<16x128xf32>
    %c0_28 = arith.constant 0 : index
    %c0_29 = arith.constant 0 : index
    %45 = vector.load %arg13[%c0_28, %c0_29] : memref<1x128xf32, #tpu.memory_space<vmem>>, vector<1x128xf32>
    %46 = vector.broadcast %45 : vector<1x128xf32> to vector<16x128xf32>
    %47 = arith.addf %44, %46 : vector<16x128xf32>
    %cst_30 = arith.constant 5.000000e-01 : f32
    %48 = vector.broadcast %cst_30 : f32 to vector<16x128xf32>
    %49 = arith.mulf %48, %47 : vector<16x128xf32>
    %cst_31 = arith.constant 0.707106769 : f32
    %50 = vector.broadcast %cst_31 : f32 to vector<16x128xf32>
    %51 = arith.mulf %47, %50 : vector<16x128xf32>
    %52 = math.erf %51 : vector<16x128xf32>
    %cst_32 = arith.constant 1.000000e+00 : f32
    %53 = vector.broadcast %cst_32 : f32 to vector<16x128xf32>
    %54 = arith.addf %53, %52 : vector<16x128xf32>
    %55 = arith.mulf %49, %54 : vector<16x128xf32>
    %56 = arith.truncf %55 : vector<16x128xf32> to vector<16x128xbf16>
    %cst_33 = arith.constant dense<0.000000e+00> : vector<16x128xf32>
    %57 = tpu.matmul %0, %56, %cst_33 {dimension_numbers = #tpu.dot_dimension_numbers<[1], [0], [0], [1], [0, 0, 1, 1], [], []>} : vector<16x16xbf16>, vector<16x128xbf16>, vector<16x128xf32> -> vector<16x128xf32>
    %58 = arith.truncf %57 : vector<16x128xf32> to vector<16x128xbf16>
    %c0_34 = arith.constant 0 : index
    %c0_35 = arith.constant 0 : index
    %59 = vector.load %arg6[%c0_34, %c0_35] : memref<128x256xbf16, #tpu.memory_space<vmem>>, vector<128x256xbf16>
    %cst_36 = arith.constant dense<0.000000e+00> : vector<16x256xf32>
    %60 = tpu.matmul %58, %59, %cst_36 {dimension_numbers = #tpu.dot_dimension_numbers<[1], [0], [0], [1], [0, 0, 1, 1], [], []>} : vector<16x128xbf16>, vector<128x256xbf16>, vector<16x256xf32> -> vector<16x256xf32>
    %c0_37 = arith.constant 0 : index
    %c0_38 = arith.constant 0 : index
    %61 = vector.load %arg9[%c0_37, %c0_38] : memref<1x256xf32, #tpu.memory_space<vmem>>, vector<1x256xf32>
    %62 = vector.broadcast %61 : vector<1x256xf32> to vector<16x256xf32>
    %63 = arith.addf %60, %62 : vector<16x256xf32>
    %cst_39 = arith.constant 5.000000e-01 : f32
    %64 = vector.broadcast %cst_39 : f32 to vector<16x256xf32>
    %65 = arith.mulf %64, %63 : vector<16x256xf32>
    %cst_40 = arith.constant 0.707106769 : f32
    %66 = vector.broadcast %cst_40 : f32 to vector<16x256xf32>
    %67 = arith.mulf %63, %66 : vector<16x256xf32>
    %68 = math.erf %67 : vector<16x256xf32>
    %cst_41 = arith.constant 1.000000e+00 : f32
    %69 = vector.broadcast %cst_41 : f32 to vector<16x256xf32>
    %70 = arith.addf %69, %68 : vector<16x256xf32>
    %71 = arith.mulf %65, %70 : vector<16x256xf32>
    %72 = arith.truncf %71 : vector<16x256xf32> to vector<16x256xbf16>
    %cst_42 = arith.constant dense<0.000000e+00> : vector<16x256xf32>
    %73 = tpu.matmul %0, %72, %cst_42 {dimension_numbers = #tpu.dot_dimension_numbers<[1], [0], [0], [1], [0, 0, 1, 1], [], []>} : vector<16x16xbf16>, vector<16x256xbf16>, vector<16x256xf32> -> vector<16x256xf32>
    %74 = arith.truncf %73 : vector<16x256xf32> to vector<16x256xbf16>
    %c0_43 = arith.constant 0 : index
    %c0_44 = arith.constant 0 : index
    %75 = vector.load %arg7[%c0_43, %c0_44] : memref<256x256xbf16, #tpu.memory_space<vmem>>, vector<256x256xbf16>
    %cst_45 = arith.constant dense<0.000000e+00> : vector<16x256xf32>
    %76 = tpu.matmul %74, %75, %cst_45 {dimension_numbers = #tpu.dot_dimension_numbers<[1], [0], [0], [1], [0, 0, 1, 1], [], []>} : vector<16x256xbf16>, vector<256x256xbf16>, vector<16x256xf32> -> vector<16x256xf32>
    %c0_46 = arith.constant 0 : index
    %c0_47 = arith.constant 0 : index
    %77 = vector.load %arg14[%c0_46, %c0_47] : memref<1x256xf32, #tpu.memory_space<vmem>>, vector<1x256xf32>
    %78 = vector.broadcast %77 : vector<1x256xf32> to vector<16x256xf32>
    %79 = arith.mulf %76, %78 : vector<16x256xf32>
    %c0_48 = arith.constant 0 : index
    %c0_49 = arith.constant 0 : index
    %80 = vector.load %arg15[%c0_48, %c0_49] : memref<1x256xf32, #tpu.memory_space<vmem>>, vector<1x256xf32>
    %81 = vector.broadcast %80 : vector<1x256xf32> to vector<16x256xf32>
    %82 = arith.addf %79, %81 : vector<16x256xf32>
    %cst_50 = arith.constant 5.000000e-01 : f32
    %83 = vector.broadcast %cst_50 : f32 to vector<16x256xf32>
    %84 = arith.mulf %83, %82 : vector<16x256xf32>
    %cst_51 = arith.constant 0.707106769 : f32
    %85 = vector.broadcast %cst_51 : f32 to vector<16x256xf32>
    %86 = arith.mulf %82, %85 : vector<16x256xf32>
    %87 = math.erf %86 : vector<16x256xf32>
    %cst_52 = arith.constant 1.000000e+00 : f32
    %88 = vector.broadcast %cst_52 : f32 to vector<16x256xf32>
    %89 = arith.addf %88, %87 : vector<16x256xf32>
    %90 = arith.mulf %84, %89 : vector<16x256xf32>
    %c0_53 = arith.constant 0 : index
    %c0_54 = arith.constant 0 : index
    %91 = vector.load %arg2[%c0_53, %c0_54] : memref<16x2xf32, #tpu.memory_space<vmem>>, vector<16x2xf32>
    %92 = vector.shape_cast %91 : vector<16x2xf32> to vector<16x2x1xf32>
    %cst_55 = arith.constant 0.000000e+00 : f32
    %93 = vector.broadcast %cst_55 : f32 to vector<16x2x1xf32>
    %94 = arith.cmpf ogt, %92, %93 : vector<16x2x1xf32>
    %95 = vector.shape_cast %90 : vector<16x256xf32> to vector<16x1x256xf32>
    %cst_56 = arith.constant -1.000000e+30 : f32
    %96 = vector.shape_cast %94 : vector<16x2x1xi1> to vector<16x2x1xi1>
    %97 = vector.broadcast %96 : vector<16x2x1xi1> to vector<16x2x256xi1>
    %98 = vector.shape_cast %95 : vector<16x1x256xf32> to vector<16x1x256xf32>
    %99 = vector.broadcast %98 : vector<16x1x256xf32> to vector<16x2x256xf32>
    %100 = vector.broadcast %cst_56 : f32 to vector<16x2x256xf32>
    %101 = arith.select %97, %99, %100 : vector<16x2x256xi1>, vector<16x2x256xf32>
    %cst_57 = arith.constant dense<0xFF800000> : vector<2x256xf32>
    %102 = vector.multi_reduction <maximumf>, %101, %cst_57 [0] : vector<16x2x256xf32> to vector<2x256xf32>
    %c0_58 = arith.constant 0 : index
    %c0_59 = arith.constant 0 : index
    %103 = vector.load %arg16[%c0_58, %c0_59] : memref<256x2xf32, #tpu.memory_space<vmem>>, vector<256x2xf32>
    %cst_60 = arith.constant dense<0.000000e+00> : vector<2x2xf32>
    %104 = tpu.matmul %102, %103, %cst_60 {dimension_numbers = #tpu.dot_dimension_numbers<[1], [0], [0], [1], [0, 0, 1, 1], [], []>} : vector<2x256xf32>, vector<256x2xf32>, vector<2x2xf32> -> vector<2x2xf32>
    %c0_61 = arith.constant 0 : index
    %c0_62 = arith.constant 0 : index
    %105 = vector.load %arg17[%c0_61, %c0_62] : memref<1x2xf32, #tpu.memory_space<vmem>>, vector<1x2xf32>
    %106 = vector.broadcast %105 : vector<1x2xf32> to vector<2x2xf32>
    %107 = arith.addf %104, %106 : vector<2x2xf32>
    %c0_63 = arith.constant 0 : index
    %c0_64 = arith.constant 0 : index
    %108 = vector.load %arg18[%c0_63, %c0_64] : memref<2x2xf32, #tpu.memory_space<vmem>>, vector<2x2xf32>
    tpu.vector_store %arg18[%c0_63, %c0_64], %107 {strides = array<i32>} : memref<2x2xf32, #tpu.memory_space<vmem>>, vector<2x2xf32>,
    return
  }
}

</mosaic_0001>

<llo_original>
// kernel: tpu_custom_call.1
$region0: #{tpu_custom_call.1}
  #allocation0 [shape = 'u32[]', space=smem, size = 0x4, offset = 0x4, fixed_abs, tag = 'smem constant byte address 0x4 - core index']
  #allocation1 [shape = 'u32[144,128]{1,0:T(1,128)}', space=vmem, size = 0x12000, scoped, tag = 'internal scratch']
  %s0 = inlined_call_operand.vmem [shape: f32[16,2], index: 0, kind: input, shape index: {}]
  %s1 = inlined_call_operand.hbm [shape: bf16[16,16], index: 1, kind: input, shape index: {}]
  %s2 = inlined_call_operand.vmem [shape: f32[16,2], index: 2, kind: input, shape index: {}]
  %s3 = inlined_call_operand.hbm [shape: bf16[2,64], index: 3, kind: input, shape index: {}]
  %s4 = inlined_call_operand.vmem [shape: bf16[64,64], index: 4, kind: input, shape index: {}]
  %s5 = inlined_call_operand.vmem [shape: bf16[64,128], index: 5, kind: input, shape index: {}]
  %s6 = inlined_call_operand.hbm [shape: bf16[128,256], index: 6, kind: input, shape index: {}]
  %s7 = inlined_call_operand.vmem [shape: bf16[256,256], index: 7, kind: input, shape index: {}]
  %s8 = inlined_call_operand.hbm [shape: f32[1,64], index: 8, kind: input, shape index: {}]
  %s9 = inlined_call_operand.vmem [shape: f32[1,256], index: 9, kind: input, shape index: {}]
  %s10 = inlined_call_operand.vmem [shape: f32[1,64], index: 10, kind: input, shape index: {}]
  %s11 = inlined_call_operand.vmem [shape: f32[1,64], index: 11, kind: input, shape index: {}]
  %s12 = inlined_call_operand.vmem [shape: f32[1,128], index: 12, kind: input, shape index: {}]
  %s13 = inlined_call_operand.vmem [shape: f32[1,128], index: 13, kind: input, shape index: {}]
  %s14 = inlined_call_operand.vmem [shape: f32[1,256], index: 14, kind: input, shape index: {}]
  %s15 = inlined_call_operand.vmem [shape: f32[1,256], index: 15, kind: input, shape index: {}]
  %s16 = inlined_call_operand.vmem [shape: f32[256,2], index: 16, kind: input, shape index: {}]
  %s17 = inlined_call_operand.vmem [shape: f32[1,2], index: 17, kind: input, shape index: {}]
  %s18 = inlined_call_operand.hbm [shape: f32[2,2], index: 18, kind: output, shape index: {}]
  %s19 = sld [smem:[#allocation0]]
  $region98: #{tpu_custom_call.1} parent=0
    _
  %s21 = ssub.s32 1, %s19
  %s22 = scalar_select 0, %s21, %s19
  $region1: #{tpu_custom_call.1} parent=0
    #allocation2 [shape = 'u8[4096]{0}', space=vmem, size = 0x1000, scoped, tag = 'input window, operand 1, single buffered']
    #allocation3 [shape = 's32[1]{0}', space=sflag, size = 0x4, scoped, tag = 'scoped memory for tpu_custom_call.1']
    #allocation4 [shape = 's32[1]{0}', space=sflag, size = 0x4, scoped, tag = 'scoped memory for tpu_custom_call.1']
    #allocation5 [shape = 'u8[512]{0}', space=vmem, size = 0x400, scoped, tag = 'input window, operand 3, single buffered']
    #allocation6 [shape = 's32[1]{0}', space=sflag, size = 0x4, scoped, tag = 'scoped memory for tpu_custom_call.1']
    #allocation7 [shape = 'u8[65536]{0}', space=vmem, size = 0x10000, scoped, tag = 'input window, operand 6, single buffered']
    #allocation8 [shape = 'u8[512]{0}', space=vmem, size = 0x400, scoped, tag = 'input window, operand 8, single buffered']
    #allocation9 [shape = 's32[1]{0}', space=sflag, size = 0x4, scoped, tag = 'scoped memory for tpu_custom_call.1']
    #allocation10 [shape = 'u8[1024]{0}', space=vmem, size = 0x400, scoped, tag = 'output window, operand 0, single buffered']
    %23 = vsyncpa [#allocation3], 0
    %24 = vsyncpa [#allocation6], 0
    %25 = vsyncpa [#allocation9], 0
    %26 = vsyncpa [#allocation4], 0
    // Predicated region
    $region2: #{tpu_custom_call.1} parent=1 // pred_check
      _
    $region3: #{tpu_custom_call.1} parent=1 // pred_check_branch
      %28 = sbr.rel (0) target = $region5
    $region4: #{tpu_custom_call.1} parent=1 // pred_region
      _
    $region5: #{tpu_custom_call.1} parent=1 // pred_fallthru
      _
    // Predicated region
    $region6: #{tpu_custom_call.1} parent=1 // pred_check
      _
    $region7: #{tpu_custom_call.1} parent=1 // pred_check_branch
      %30 = sbr.rel (0) target = $region9
    $region8: #{tpu_custom_call.1} parent=1 // pred_region
      %s32 = ssub.s32 128, 128
      %33 = vsyncadd [#allocation3], %s32
      %s34 = sshll.u32 [#allocation2], 4
      %s35 = int_to_ptr.vmem [resolvable:$true] %s34
      %40 = dma.hbm_to_vmem [thread:$0]  %s1, 128, %s35, [#allocation3], 64, 64, 4
    $region9: #{tpu_custom_call.1} parent=1 // pred_fallthru
      _
    // Predicated region
    $region10: #{tpu_custom_call.1} parent=1 // pred_check
      _
    $region11: #{tpu_custom_call.1} parent=1 // pred_check_branch
      %42 = sbr.rel (0) target = $region13
    $region12: #{tpu_custom_call.1} parent=1 // pred_region
      _
    $region13: #{tpu_custom_call.1} parent=1 // pred_fallthru
      _
    // Predicated region
    $region14: #{tpu_custom_call.1} parent=1 // pred_check
      _
    $region15: #{tpu_custom_call.1} parent=1 // pred_check_branch
      %44 = sbr.rel (0) target = $region17
    $region16: #{tpu_custom_call.1} parent=1 // pred_region
      %s46 = ssub.s32 16, 16
      %47 = vsyncadd [#allocation6], %s46
      %s49 = sshll.u32 [#allocation5], 4
      %s50 = int_to_ptr.vmem [resolvable:$true] %s49
      %52 = dma.hbm_to_vmem [thread:$0]  %s3, 16, %s50, [#allocation6]
    $region17: #{tpu_custom_call.1} parent=1 // pred_fallthru
      _
    // Predicated region
    $region18: #{tpu_custom_call.1} parent=1 // pred_check
      _
    $region19: #{tpu_custom_call.1} parent=1 // pred_check_branch
      %54 = sbr.rel (0) target = $region21
    $region20: #{tpu_custom_call.1} parent=1 // pred_region
      _
    $region21: #{tpu_custom_call.1} parent=1 // pred_fallthru
      _
    // Predicated region
    $region22: #{tpu_custom_call.1} parent=1 // pred_check
      _
    $region23: #{tpu_custom_call.1} parent=1 // pred_check_branch
      %56 = sbr.rel (0) target = $region25
    $region24: #{tpu_custom_call.1} parent=1 // pred_region
      _
    $region25: #{tpu_custom_call.1} parent=1 // pred_fallthru
      _
    // Predicated region
    $region26: #{tpu_custom_call.1} parent=1 // pred_check
      _
    $region27: #{tpu_custom_call.1} parent=1 // pred_check_branch
      %58 = sbr.rel (0) target = $region29
    $region28: #{tpu_custom_call.1} parent=1 // pred_region
      %s60 = ssub.s32 2048, 2048
      %61 = vsyncadd [#allocation6], %s60
      %s62 = sshll.u32 [#allocation7], 4
      %s63 = int_to_ptr.vmem [resolvable:$true] %s62
      %68 = dma.hbm_to_vmem [thread:$0]  %s6, 2048, %s63, [#allocation6], 128, 128, 8
    $region29: #{tpu_custom_call.1} parent=1 // pred_fallthru
      _
    // Predicated region
    $region30: #{tpu_custom_call.1} parent=1 // pred_check
      _
    $region31: #{tpu_custom_call.1} parent=1 // pred_check_branch
      %70 = sbr.rel (0) target = $region33
    $region32: #{tpu_custom_call.1} parent=1 // pred_region
      _
    $region33: #{tpu_custom_call.1} parent=1 // pred_fallthru
      _
    // Predicated region
    $region34: #{tpu_custom_call.1} parent=1 // pred_check
      _
    $region35: #{tpu_custom_call.1} parent=1 // pred_check_branch
      %72 = sbr.rel (0) target = $region37
    $region36: #{tpu_custom_call.1} parent=1 // pred_region
      %s74 = ssub.s32 16, 16
      %75 = vsyncadd [#allocation9], %s74
      %s77 = sshll.u32 [#allocation8], 4
      %s78 = int_to_ptr.vmem [resolvable:$true] %s77
      %80 = dma.hbm_to_vmem [thread:$0]  %s8, 16, %s78, [#allocation9]
    $region37: #{tpu_custom_call.1} parent=1 // pred_fallthru
      _
    // Predicated region
    $region38: #{tpu_custom_call.1} parent=1 // pred_check
      _
    $region39: #{tpu_custom_call.1} parent=1 // pred_check_branch
      %82 = sbr.rel (0) target = $region41
    $region40: #{tpu_custom_call.1} parent=1 // pred_region
      _
    $region41: #{tpu_custom_call.1} parent=1 // pred_fallthru
      _
    // Predicated region
    $region42: #{tpu_custom_call.1} parent=1 // pred_check
      _
    $region43: #{tpu_custom_call.1} parent=1 // pred_check_branch
      %84 = sbr.rel (0) target = $region45
    $region44: #{tpu_custom_call.1} parent=1 // pred_region
      _
    $region45: #{tpu_custom_call.1} parent=1 // pred_fallthru
      _
    // Predicated region
    $region46: #{tpu_custom_call.1} parent=1 // pred_check
      _
    $region47: #{tpu_custom_call.1} parent=1 // pred_check_branch
      %86 = sbr.rel (0) target = $region49
    $region48: #{tpu_custom_call.1} parent=1 // pred_region
      _
    $region49: #{tpu_custom_call.1} parent=1 // pred_fallthru
      _
    // Predicated region
    $region50: #{tpu_custom_call.1} parent=1 // pred_check
      _
    $region51: #{tpu_custom_call.1} parent=1 // pred_check_branch
      %88 = sbr.rel (0) target = $region53
    $region52: #{tpu_custom_call.1} parent=1 // pred_region
      _
    $region53: #{tpu_custom_call.1} parent=1 // pred_fallthru
      _
    // Predicated region
    $region54: #{tpu_custom_call.1} parent=1 // pred_check
      _
    $region55: #{tpu_custom_call.1} parent=1 // pred_check_branch
      %90 = sbr.rel (0) target = $region57
    $region56: #{tpu_custom_call.1} parent=1 // pred_region
      _
    $region57: #{tpu_custom_call.1} parent=1 // pred_fallthru
      _
    // Predicated region
    $region58: #{tpu_custom_call.1} parent=1 // pred_check
      _
    $region59: #{tpu_custom_call.1} parent=1 // pred_check_branch
      %92 = sbr.rel (0) target = $region61
    $region60: #{tpu_custom_call.1} parent=1 // pred_region
      _
    $region61: #{tpu_custom_call.1} parent=1 // pred_fallthru
      _
    // Predicated region
    $region62: #{tpu_custom_call.1} parent=1 // pred_check
      _
    $region63: #{tpu_custom_call.1} parent=1 // pred_check_branch
      %94 = sbr.rel (0) target = $region65
    $region64: #{tpu_custom_call.1} parent=1 // pred_region
      _
    $region65: #{tpu_custom_call.1} parent=1 // pred_fallthru
      _
    // Predicated region
    $region66: #{tpu_custom_call.1} parent=1 // pred_check
      _
    $region67: #{tpu_custom_call.1} parent=1 // pred_check_branch
      %96 = sbr.rel (0) target = $region69
    $region68: #{tpu_custom_call.1} parent=1 // pred_region
      _
    $region69: #{tpu_custom_call.1} parent=1 // pred_fallthru
      _
    // Predicated region
    $region70: #{tpu_custom_call.1} parent=1 // pred_check
      _
    $region71: #{tpu_custom_call.1} parent=1 // pred_check_branch
      %98 = sbr.rel (0) target = $region73
    $region72: #{tpu_custom_call.1} parent=1 // pred_region
      _
    $region73: #{tpu_custom_call.1} parent=1 // pred_fallthru
      _
    // Predicated region
    $region74: #{tpu_custom_call.1} parent=1 // pred_check
      _
    $region75: #{tpu_custom_call.1} parent=1 // pred_check_branch
      %100 = sbr.rel (0) target = $region77
    $region76: #{tpu_custom_call.1} parent=1 // pred_region
      %101 = dma.done [#allocation3], 128
    $region77: #{tpu_custom_call.1} parent=1 // pred_fallthru
      _
    // Predicated region
    $region78: #{tpu_custom_call.1} parent=1 // pred_check
      _
    $region79: #{tpu_custom_call.1} parent=1 // pred_check_branch
      %103 = sbr.rel (0) target = $region81
    $region80: #{tpu_custom_call.1} parent=1 // pred_region
      %104 = dma.done [#allocation6], 16
    $region81: #{tpu_custom_call.1} parent=1 // pred_fallthru
      _
    // Predicated region
    $region82: #{tpu_custom_call.1} parent=1 // pred_check
      _
    $region83: #{tpu_custom_call.1} parent=1 // pred_check_branch
      %106 = sbr.rel (0) target = $region85
    $region84: #{tpu_custom_call.1} parent=1 // pred_region
      %107 = dma.done [#allocation6], 2048
    $region85: #{tpu_custom_call.1} parent=1 // pred_fallthru
      _
    // Predicated region
    $region86: #{tpu_custom_call.1} parent=1 // pred_check
      _
    $region87: #{tpu_custom_call.1} parent=1 // pred_check_branch
      %109 = sbr.rel (0) target = $region89
    $region88: #{tpu_custom_call.1} parent=1 // pred_region
      %110 = dma.done [#allocation9], 16
    $region89: #{tpu_custom_call.1} parent=1 // pred_fallthru
      _
    %v112 = vld [vmem:[#allocation2] sm:$0xf]
    %v113 = vld [vmem:[#allocation2 + $0x4] sm:$0xf]
    %v114 = vld [vmem:[%s0] sm:$0xff]
    %v115 = vld [vmem:[%s0 + $0x8] sm:$0xff]
    %v116 = vpack.c.bf16 %v115, %v114
    %v119 = vunpack.c.l.b16 %v112
    %v120 = vunpack.c.l.b16 %v113
    %v121 = vpack.c.b16 %v120, %v119
    %vm122 = vcmask 130048
    %v124 = vsel %vm122, %v121, 0
    %126 = vmatprep.subr.bf16.mxu0 0
    %127 = vmatpush1.bf16.msra.mxu0 %v116
    %128 = vmatprep.subr.bf16.mxu0 0
    %129 = vmatpush1.bf16.msra.mxu0 0
    %130 = vmatprep.subr.bf16.mxu0 0
    %131 = vmatpush1.bf16.msra.mxu0 0
    %132 = vmatprep.subr.bf16.mxu0 0
    %133 = vmatpush1.bf16.msra.mxu0 0
    %134 = vmatprep.subr.bf16.mxu0 0
    %135 = vmatpush1.bf16.msra.mxu0 0
    %136 = vmatprep.subr.bf16.mxu0 0
    %137 = vmatpush1.bf16.msra.mxu0 0
    %138 = vmatprep.subr.bf16.mxu0 0
    %139 = vmatpush1.bf16.msra.mxu0 0
    %140 = vmatprep.subr.bf16.mxu0 0
    %141 = vmatpush1.bf16.msra.mxu0 0
    %142 = vmatprep.subr.bf16.mxu0 0
    %143 = vmatpush1.bf16.msra.mxu0 0
    %144 = vmatprep.subr.bf16.mxu0 0
    %145 = vmatpush1.bf16.msra.mxu0 0
    %146 = vmatprep.subr.bf16.mxu0 0
    %147 = vmatpush1.bf16.msra.mxu0 0
    %148 = vmatprep.subr.bf16.mxu0 0
    %149 = vmatpush1.bf16.msra.mxu0 0
    %150 = vmatprep.subr.bf16.mxu0 0
    %151 = vmatpush1.bf16.msra.mxu0 0
    %152 = vmatprep.subr.bf16.mxu0 0
    %153 = vmatpush1.bf16.msra.mxu0 0
    %154 = vmatprep.subr.bf16.mxu0 0
    %155 = vmatpush1.bf16.msra.mxu0 0
    %156 = vmatprep.subr.bf16.mxu0 0
    %157 = vmatpush1.bf16.msra.mxu0 0
    %158 = vmatprep.mubr.bf16.mxu0 0
    %159 = vmatmul.mubr.bf16.gmra.mrb[0].mxu0 %v124
    %v160 = vpop.f32.mrb[0].mxu0
    %v161 = vadd.f32 0.0, %v160
    %v162 = vpop.f32.mrb[0].mxu0
    %v163 = vpop.f32.mrb[0].mxu0
    %v164 = vadd.f32 0.0, %v163
    %v165 = vpop.f32.mrb[0].mxu0
    %166 = vdwg.mxu0
    %v167 = vpack.c.bf16 %v164, %v161
    %v168 = vld [vmem:[#allocation5] sm:$0x1]
    %vm169 = vcmask 15360
    %v171 = vsel %vm169, %v167, 0
    %vm173 = vcmask 1040384
    %v175 = vsel %vm173, %v168, 0
    %177 = vmatprep.subr.bf16.mxu0 0
    %178 = vmatpush1.bf16.msra.mxu0 %v175
    %179 = vmatprep.subr.bf16.mxu0 0
    %180 = vmatpush1.bf16.msra.mxu0 0
    %181 = vmatprep.subr.bf16.mxu0 0
    %182 = vmatpush1.bf16.msra.mxu0 0
    %183 = vmatprep.subr.bf16.mxu0 0
    %184 = vmatpush1.bf16.msra.mxu0 0
    %185 = vmatprep.subr.bf16.mxu0 0
    %186 = vmatpush1.bf16.msra.mxu0 0
    %187 = vmatprep.subr.bf16.mxu0 0
    %188 = vmatpush1.bf16.msra.mxu0 0
    %189 = vmatprep.subr.bf16.mxu0 0
    %190 = vmatpush1.bf16.msra.mxu0 0
    %191 = vmatprep.subr.bf16.mxu0 0
    %192 = vmatpush1.bf16.msra.mxu0 0
    %193 = vmatprep.subr.bf16.mxu0 0
    %194 = vmatpush1.bf16.msra.mxu0 0
    %195 = vmatprep.subr.bf16.mxu0 0
    %196 = vmatpush1.bf16.msra.mxu0 0
    %197 = vmatprep.subr.bf16.mxu0 0
    %198 = vmatpush1.bf16.msra.mxu0 0
    %199 = vmatprep.subr.bf16.mxu0 0
    %200 = vmatpush1.bf16.msra.mxu0 0
    %201 = vmatprep.subr.bf16.mxu0 0
    %202 = vmatpush1.bf16.msra.mxu0 0
    %203 = vmatprep.subr.bf16.mxu0 0
    %204 = vmatpush1.bf16.msra.mxu0 0
    %205 = vmatprep.subr.bf16.mxu0 0
    %206 = vmatpush1.bf16.msra.mxu0 0
    %207 = vmatprep.subr.bf16.mxu0 0
    %208 = vmatpush1.bf16.msra.mxu0 0
    %209 = vmatprep.mubr.bf16.mxu0 0
    %210 = vmatmul.mubr.bf16.gmra.mrb[0].mxu0 %v171
    %v211 = vpop.f32.mrb[0].mxu0
    %v212 = vadd.f32 0.0, %v211
    %v213 = vpop.f32.mrb[0].mxu0
    %v214 = vpop.f32.mrb[0].mxu0
    %v215 = vadd.f32 0.0, %v214
    %v216 = vpop.f32.mrb[0].mxu0
    %217 = vdwg.mxu0
    %v218 = vld [vmem:[%s10] sm:$0x1]
    %v220 = vlaneseq
    %v221 = vshrl.u32 %v220, 7
    %v222 = vsub.s32 0, %v221
    %v223 = vrot.slane %v218, %v222
    %v225 = vmul.f32 %v212, %v223
    %v226 = vmul.f32 %v215, %v223
    %v227 = vld [vmem:[%s11] sm:$0x1]
    %v229 = vlaneseq
    %v230 = vshrl.u32 %v229, 7
    %v231 = vsub.s32 0, %v230
    %v232 = vrot.slane %v227, %v231
    %v234 = vadd.f32 %v225, %v232
    %v235 = vadd.f32 %v226, %v232
    %v236 = vmul.f32 %v234, 0.5
    %v237 = vmul.f32 %v235, 0.5
    %v238 = vmul.f32 %v234, 0.70710677
    %v239 = vmul.f32 %v235, 0.70710677
    %v240 = verf.f32.pop %v238
    %v241 = verf.f32.pop %v239
    %v242 = vadd.f32 %v240, 1.0
    %v243 = vadd.f32 %v241, 1.0
    %v244 = vmul.f32 %v236, %v242
    %v245 = vmul.f32 %v237, %v243
    %v246 = vpack.c.bf16 %v245, %v244
    %247 = vmatprep.subr.bf16.mxu0 0
    %248 = vmatpush1.bf16.msra.mxu0 %v246
    %249 = vmatprep.subr.bf16.mxu0 0
    %250 = vmatpush1.bf16.msra.mxu0 0
    %251 = vmatprep.subr.bf16.mxu0 0
    %252 = vmatpush1.bf16.msra.mxu0 0
    %253 = vmatprep.subr.bf16.mxu0 0
    %254 = vmatpush1.bf16.msra.mxu0 0
    %255 = vmatprep.subr.bf16.mxu0 0
    %256 = vmatpush1.bf16.msra.mxu0 0
    %257 = vmatprep.subr.bf16.mxu0 0
    %258 = vmatpush1.bf16.msra.mxu0 0
    %259 = vmatprep.subr.bf16.mxu0 0
    %260 = vmatpush1.bf16.msra.mxu0 0
    %261 = vmatprep.subr.bf16.mxu0 0
    %262 = vmatpush1.bf16.msra.mxu0 0
    %263 = vmatprep.subr.bf16.mxu0 0
    %264 = vmatpush1.bf16.msra.mxu0 0
    %265 = vmatprep.subr.bf16.mxu0 0
    %266 = vmatpush1.bf16.msra.mxu0 0
    %267 = vmatprep.subr.bf16.mxu0 0
    %268 = vmatpush1.bf16.msra.mxu0 0
    %269 = vmatprep.subr.bf16.mxu0 0
    %270 = vmatpush1.bf16.msra.mxu0 0
    %271 = vmatprep.subr.bf16.mxu0 0
    %272 = vmatpush1.bf16.msra.mxu0 0
    %273 = vmatprep.subr.bf16.mxu0 0
    %274 = vmatpush1.bf16.msra.mxu0 0
    %275 = vmatprep.subr.bf16.mxu0 0
    %276 = vmatpush1.bf16.msra.mxu0 0
    %277 = vmatprep.subr.bf16.mxu0 0
    %278 = vmatpush1.bf16.msra.mxu0 0
    %279 = vmatprep.mubr.bf16.mxu0 0
    %280 = vmatmul.mubr.bf16.gmra.mrb[0].mxu0 %v124
    %v281 = vpop.f32.mrb[0].mxu0
    %v282 = vadd.f32 0.0, %v281
    %v283 = vpop.f32.mrb[0].mxu0
    %v284 = vpop.f32.mrb[0].mxu0
    %v285 = vadd.f32 0.0, %v284
    %v286 = vpop.f32.mrb[0].mxu0
    %287 = vdwg.mxu0
    %v288 = vpack.c.bf16 %v285, %v282
    %v289 = vld [vmem:[%s4] sm:$0xf]
    %v290 = vld [vmem:[%s4 + $0x4] sm:$0xf]
    %v291 = vld [vmem:[%s4 + $0x8] sm:$0xf]
    %v292 = vld [vmem:[%s4 + $0xc] sm:$0xf]
    %v293 = vld [vmem:[%s4 + $0x10] sm:$0xf]
    %v294 = vld [vmem:[%s4 + $0x14] sm:$0xf]
    %v295 = vld [vmem:[%s4 + $0x18] sm:$0xf]
    %v296 = vld [vmem:[%s4 + $0x1c] sm:$0xf]
    %v297 = vld [vmem:[#allocation8] sm:$0x1]
    %v299 = vlaneseq
    %v300 = vshrl.u32 %v299, 7
    %v301 = vsub.s32 0, %v300
    %v302 = vrot.slane %v297, %v301
    %v312 = vunpack.c.l.b16 %v289
    %v313 = vunpack.c.l.b16 %v290
    %v314 = vunpack.c.l.b16 %v291
    %v315 = vunpack.c.l.b16 %v292
    %v316 = vunpack.c.l.b16 %v293
    %v317 = vunpack.c.l.b16 %v294
    %v318 = vunpack.c.l.b16 %v295
    %v319 = vunpack.c.l.b16 %v296
    %v320 = vpack.c.b16 %v313, %v312
    %v321 = vpack.c.b16 %v315, %v314
    %v322 = vpack.c.b16 %v317, %v316
    %v323 = vpack.c.b16 %v319, %v318
    %vm328 = vcmask 523264
    %v330 = vsel %vm328, %v288, 0
    %332 = vmatprep.subr.bf16.mxu0 0
    %333 = vmatpush1.bf16.msra.mxu0 %v320
    %334 = vmatprep.subr.bf16.mxu0 0
    %335 = vmatpush1.bf16.msra.mxu0 %v321
    %336 = vmatprep.subr.bf16.mxu0 0
    %337 = vmatpush1.bf16.msra.mxu0 %v322
    %338 = vmatprep.subr.bf16.mxu0 0
    %339 = vmatpush1.bf16.msra.mxu0 %v323
    %340 = vmatprep.subr.bf16.mxu0 0
    %341 = vmatpush1.bf16.msra.mxu0 0
    %342 = vmatprep.subr.bf16.mxu0 0
    %343 = vmatpush1.bf16.msra.mxu0 0
    %344 = vmatprep.subr.bf16.mxu0 0
    %345 = vmatpush1.bf16.msra.mxu0 0
    %346 = vmatprep.subr.bf16.mxu0 0
    %347 = vmatpush1.bf16.msra.mxu0 0
    %348 = vmatprep.subr.bf16.mxu0 0
    %349 = vmatpush1.bf16.msra.mxu0 0
    %350 = vmatprep.subr.bf16.mxu0 0
    %351 = vmatpush1.bf16.msra.mxu0 0
    %352 = vmatprep.subr.bf16.mxu0 0
    %353 = vmatpush1.bf16.msra.mxu0 0
    %354 = vmatprep.subr.bf16.mxu0 0
    %355 = vmatpush1.bf16.msra.mxu0 0
    %356 = vmatprep.subr.bf16.mxu0 0
    %357 = vmatpush1.bf16.msra.mxu0 0
    %358 = vmatprep.subr.bf16.mxu0 0
    %359 = vmatpush1.bf16.msra.mxu0 0
    %360 = vmatprep.subr.bf16.mxu0 0
    %361 = vmatpush1.bf16.msra.mxu0 0
    %362 = vmatprep.subr.bf16.mxu0 0
    %363 = vmatpush1.bf16.msra.mxu0 0
    %364 = vmatprep.mubr.bf16.mxu0 0
    %365 = vmatmul.mubr.bf16.gmra.mrb[0].mxu0 %v330
    %v366 = vpop.f32.mrb[0].mxu0
    %v367 = vadd.f32 %v302, %v366
    %v368 = vpop.f32.mrb[0].mxu0
    %v369 = vpop.f32.mrb[0].mxu0
    %v370 = vadd.f32 %v302, %v369
    %v371 = vpop.f32.mrb[0].mxu0
    %372 = vdwg.mxu0
    %v373 = vmul.f32 %v367, 0.5
    %v374 = vmul.f32 %v370, 0.5
    %v375 = vmul.f32 %v367, 0.70710677
    %v376 = vmul.f32 %v370, 0.70710677
    %v377 = verf.f32.pop %v375
    %v378 = verf.f32.pop %v376
    %v379 = vadd.f32 %v377, 1.0
    %v380 = vadd.f32 %v378, 1.0
    %v381 = vmul.f32 %v373, %v379
    %v382 = vmul.f32 %v374, %v380
    %v383 = vpack.c.bf16 %v382, %v381
    %384 = vmatprep.subr.bf16.mxu0 0
    %385 = vmatpush1.bf16.msra.mxu0 %v383
    %386 = vmatprep.subr.bf16.mxu0 0
    %387 = vmatpush1.bf16.msra.mxu0 0
    %388 = vmatprep.subr.bf16.mxu0 0
    %389 = vmatpush1.bf16.msra.mxu0 0
    %390 = vmatprep.subr.bf16.mxu0 0
    %391 = vmatpush1.bf16.msra.mxu0 0
    %392 = vmatprep.subr.bf16.mxu0 0
    %393 = vmatpush1.bf16.msra.mxu0 0
    %394 = vmatprep.subr.bf16.mxu0 0
    %395 = vmatpush1.bf16.msra.mxu0 0
    %396 = vmatprep.subr.bf16.mxu0 0
    %397 = vmatpush1.bf16.msra.mxu0 0
    %398 = vmatprep.subr.bf16.mxu0 0
    %399 = vmatpush1.bf16.msra.mxu0 0
    %400 = vmatprep.subr.bf16.mxu0 0
    %401 = vmatpush1.bf16.msra.mxu0 0
    %402 = vmatprep.subr.bf16.mxu0 0
    %403 = vmatpush1.bf16.msra.mxu0 0
    %404 = vmatprep.subr.bf16.mxu0 0
    %405 = vmatpush1.bf16.msra.mxu0 0
    %406 = vmatprep.subr.bf16.mxu0 0
    %407 = vmatpush1.bf16.msra.mxu0 0
    %408 = vmatprep.subr.bf16.mxu0 0
    %409 = vmatpush1.bf16.msra.mxu0 0
    %410 = vmatprep.subr.bf16.mxu0 0
    %411 = vmatpush1.bf16.msra.mxu0 0
    %412 = vmatprep.subr.bf16.mxu0 0
    %413 = vmatpush1.bf16.msra.mxu0 0
    %414 = vmatprep.subr.bf16.mxu0 0
    %415 = vmatpush1.bf16.msra.mxu0 0
    %416 = vmatprep.mubr.bf16.mxu0 0
    %417 = vmatmul.mubr.bf16.gmra.mrb[0].mxu0 %v124
    %v418 = vpop.f32.mrb[0].mxu0
    %v419 = vadd.f32 0.0, %v418
    %v420 = vpop.f32.mrb[0].mxu0
    %v421 = vpop.f32.mrb[0].mxu0
    %v422 = vadd.f32 0.0, %v421
    %v423 = vpop.f32.mrb[0].mxu0
    %424 = vdwg.mxu0
    %v425 = vpack.c.bf16 %v422, %v419
    %v426 = vld [vmem:[%s5] sm:$0xf]
    %v427 = vld [vmem:[%s5 + $0x4] sm:$0xf]
    %v428 = vld [vmem:[%s5 + $0x8] sm:$0xf]
    %v429 = vld [vmem:[%s5 + $0xc] sm:$0xf]
    %v430 = vld [vmem:[%s5 + $0x10] sm:$0xf]
    %v431 = vld [vmem:[%s5 + $0x14] sm:$0xf]
    %v432 = vld [vmem:[%s5 + $0x18] sm:$0xf]
    %v433 = vld [vmem:[%s5 + $0x1c] sm:$0xf]
    %v442 = vunpack.c.l.b16 %v426
    %v443 = vunpack.c.l.b16 %v427
    %v444 = vunpack.c.l.b16 %v428
    %v445 = vunpack.c.l.b16 %v429
    %v446 = vunpack.c.l.b16 %v430
    %v447 = vunpack.c.l.b16 %v431
    %v448 = vunpack.c.l.b16 %v432
    %v449 = vunpack.c.l.b16 %v433
    %v450 = vpack.c.b16 %v443, %v442
    %v451 = vpack.c.b16 %v445, %v444
    %v452 = vpack.c.b16 %v447, %v446
    %v453 = vpack.c.b16 %v449, %v448
    %v459 = vsel %vm328, %v425, 0
    %461 = vmatprep.subr.bf16.mxu0 0
    %462 = vmatpush1.bf16.msra.mxu0 %v450
    %463 = vmatprep.subr.bf16.mxu0 0
    %464 = vmatpush1.bf16.msra.mxu0 %v451
    %465 = vmatprep.subr.bf16.mxu0 0
    %466 = vmatpush1.bf16.msra.mxu0 %v452
    %467 = vmatprep.subr.bf16.mxu0 0
    %468 = vmatpush1.bf16.msra.mxu0 %v453
    %469 = vmatprep.subr.bf16.mxu0 0
    %470 = vmatpush1.bf16.msra.mxu0 0
    %471 = vmatprep.subr.bf16.mxu0 0
    %472 = vmatpush1.bf16.msra.mxu0 0
    %473 = vmatprep.subr.bf16.mxu0 0
    %474 = vmatpush1.bf16.msra.mxu0 0
    %475 = vmatprep.subr.bf16.mxu0 0
    %476 = vmatpush1.bf16.msra.mxu0 0
    %477 = vmatprep.subr.bf16.mxu0 0
    %478 = vmatpush1.bf16.msra.mxu0 0
    %479 = vmatprep.subr.bf16.mxu0 0
    %480 = vmatpush1.bf16.msra.mxu0 0
    %481 = vmatprep.subr.bf16.mxu0 0
    %482 = vmatpush1.bf16.msra.mxu0 0
    %483 = vmatprep.subr.bf16.mxu0 0
    %484 = vmatpush1.bf16.msra.mxu0 0
    %485 = vmatprep.subr.bf16.mxu0 0
    %486 = vmatpush1.bf16.msra.mxu0 0
    %487 = vmatprep.subr.bf16.mxu0 0
    %488 = vmatpush1.bf16.msra.mxu0 0
    %489 = vmatprep.subr.bf16.mxu0 0
    %490 = vmatpush1.bf16.msra.mxu0 0
    %491 = vmatprep.subr.bf16.mxu0 0
    %492 = vmatpush1.bf16.msra.mxu0 0
    %493 = vmatprep.mubr.bf16.mxu0 0
    %494 = vmatmul.mubr.bf16.gmra.mrb[0].mxu0 %v459
    %v495 = vpop.f32.mrb[0].mxu0
    %v496 = vadd.f32 0.0, %v495
    %v497 = vpop.f32.mrb[0].mxu0
    %v498 = vpop.f32.mrb[0].mxu0
    %v499 = vadd.f32 0.0, %v498
    %v500 = vpop.f32.mrb[0].mxu0
    %501 = vdwg.mxu0
    %v502 = vld [vmem:[%s12] sm:$0x1]
    %v504 = vlaneseq
    %v505 = vshrl.u32 %v504, 7
    %v506 = vsub.s32 0, %v505
    %v507 = vrot.slane %v502, %v506
    %v509 = vmul.f32 %v496, %v507
    %v510 = vmul.f32 %v499, %v507
    %v511 = vld [vmem:[%s13] sm:$0x1]
    %v513 = vlaneseq
    %v514 = vshrl.u32 %v513, 7
    %v515 = vsub.s32 0, %v514
    %v516 = vrot.slane %v511, %v515
    %v518 = vadd.f32 %v509, %v516
    %v519 = vadd.f32 %v510, %v516
    %v520 = vmul.f32 %v518, 0.5
    %v521 = vmul.f32 %v519, 0.5
    %v522 = vmul.f32 %v518, 0.70710677
    %v523 = vmul.f32 %v519, 0.70710677
    %v524 = verf.f32.pop %v522
    %v525 = verf.f32.pop %v523
    %v526 = vadd.f32 %v524, 1.0
    %v527 = vadd.f32 %v525, 1.0
    %v528 = vmul.f32 %v520, %v526
    %v529 = vmul.f32 %v521, %v527
    %v530 = vpack.c.bf16 %v529, %v528
    %531 = vmatprep.subr.bf16.mxu0 0
    %532 = vmatpush1.bf16.msra.mxu0 %v530
    %533 = vmatprep.subr.bf16.mxu0 0
    %534 = vmatpush1.bf16.msra.mxu0 0
    %535 = vmatprep.subr.bf16.mxu0 0
    %536 = vmatpush1.bf16.msra.mxu0 0
    %537 = vmatprep.subr.bf16.mxu0 0
    %538 = vmatpush1.bf16.msra.mxu0 0
    %539 = vmatprep.subr.bf16.mxu0 0
    %540 = vmatpush1.bf16.msra.mxu0 0
    %541 = vmatprep.subr.bf16.mxu0 0
    %542 = vmatpush1.bf16.msra.mxu0 0
    %543 = vmatprep.subr.bf16.mxu0 0
    %544 = vmatpush1.bf16.msra.mxu0 0
    %545 = vmatprep.subr.bf16.mxu0 0
    %546 = vmatpush1.bf16.msra.mxu0 0
    %547 = vmatprep.subr.bf16.mxu0 0
    %548 = vmatpush1.bf16.msra.mxu0 0
    %549 = vmatprep.subr.bf16.mxu0 0
    %550 = vmatpush1.bf16.msra.mxu0 0
    %551 = vmatprep.subr.bf16.mxu0 0
    %552 = vmatpush1.bf16.msra.mxu0 0
    %553 = vmatprep.subr.bf16.mxu0 0
    %554 = vmatpush1.bf16.msra.mxu0 0
    %555 = vmatprep.subr.bf16.mxu0 0
    %556 = vmatpush1.bf16.msra.mxu0 0
    %557 = vmatprep.subr.bf16.mxu0 0
    %558 = vmatpush1.bf16.msra.mxu0 0
    %559 = vmatprep.subr.bf16.mxu0 0
    %560 = vmatpush1.bf16.msra.mxu0 0
    %561 = vmatprep.subr.bf16.mxu0 0
    %562 = vmatpush1.bf16.msra.mxu0 0
    %563 = vmatprep.mubr.bf16.mxu0 0
    %564 = vmatmul.mubr.bf16.gmra.mrb[0].mxu0 %v124
    %v565 = vpop.f32.mrb[0].mxu0
    %v566 = vadd.f32 0.0, %v565
    %v567 = vpop.f32.mrb[0].mxu0
    %v568 = vpop.f32.mrb[0].mxu0
    %v569 = vadd.f32 0.0, %v568
    %v570 = vpop.f32.mrb[0].mxu0
    %571 = vdwg.mxu0
    %v572 = vpack.c.bf16 %v569, %v566
    %v573 = vld [vmem:[#allocation7] sm:$0xff]
    %v574 = vld [vmem:[#allocation7 + $0x8] sm:$0xff]
    %v575 = vld [vmem:[#allocation7 + $0x10] sm:$0xff]
    %v576 = vld [vmem:[#allocation7 + $0x18] sm:$0xff]
    %v577 = vld [vmem:[#allocation7 + $0x20] sm:$0xff]
    %v578 = vld [vmem:[#allocation7 + $0x28] sm:$0xff]
    %v579 = vld [vmem:[#allocation7 + $0x30] sm:$0xff]
    %v580 = vld [vmem:[#allocation7 + $0x38] sm:$0xff]
    %v581 = vld [vmem:[#allocation7 + $0x40] sm:$0xff]
    %v582 = vld [vmem:[#allocation7 + $0x48] sm:$0xff]
    %v583 = vld [vmem:[#allocation7 + $0x50] sm:$0xff]
    %v584 = vld [vmem:[#allocation7 + $0x58] sm:$0xff]
    %v585 = vld [vmem:[#allocation7 + $0x60] sm:$0xff]
    %v586 = vld [vmem:[#allocation7 + $0x68] sm:$0xff]
    %v587 = vld [vmem:[#allocation7 + $0x70] sm:$0xff]
    %v588 = vld [vmem:[#allocation7 + $0x78] sm:$0xff]
    %v589 = vld [vmem:[%s9] sm:$0x3]
    %v591 = vlaneseq
    %v592 = vshrl.u32 %v591, 7
    %v593 = vsub.s32 0, %v592
    %v594 = vrot.slane %v589, %v593
    %v595 = vlaneseq
    %v596 = vshrl.u32 %v595, 7
    %v597 = vsub.s32 1, %v596
    %v598 = vrot.slane %v589, %v597
    %v617 = vunpack.c.l.b16 %v573
    %v618 = vunpack.c.h.b16 %v573
    %v619 = vunpack.c.l.b16 %v574
    %v620 = vunpack.c.h.b16 %v574
    %v621 = vunpack.c.l.b16 %v575
    %v622 = vunpack.c.h.b16 %v575
    %v623 = vunpack.c.l.b16 %v576
    %v624 = vunpack.c.h.b16 %v576
    %v625 = vunpack.c.l.b16 %v577
    %v626 = vunpack.c.h.b16 %v577
    %v627 = vunpack.c.l.b16 %v578
    %v628 = vunpack.c.h.b16 %v578
    %v629 = vunpack.c.l.b16 %v579
    %v630 = vunpack.c.h.b16 %v579
    %v631 = vunpack.c.l.b16 %v580
    %v632 = vunpack.c.h.b16 %v580
    %v633 = vunpack.c.l.b16 %v581
    %v634 = vunpack.c.h.b16 %v581
    %v635 = vunpack.c.l.b16 %v582
    %v636 = vunpack.c.h.b16 %v582
    %v637 = vunpack.c.l.b16 %v583
    %v638 = vunpack.c.h.b16 %v583
    %v639 = vunpack.c.l.b16 %v584
    %v640 = vunpack.c.h.b16 %v584
    %v641 = vunpack.c.l.b16 %v585
    %v642 = vunpack.c.h.b16 %v585
    %v643 = vunpack.c.l.b16 %v586
    %v644 = vunpack.c.h.b16 %v586
    %v645 = vunpack.c.l.b16 %v587
    %v646 = vunpack.c.h.b16 %v587
    %v647 = vunpack.c.l.b16 %v588
    %v648 = vunpack.c.h.b16 %v588
    %v649 = vpack.c.b16 %v619, %v617
    %v650 = vpack.c.b16 %v620, %v618
    %v651 = vpack.c.b16 %v623, %v621
    %v652 = vpack.c.b16 %v624, %v622
    %v653 = vpack.c.b16 %v627, %v625
    %v654 = vpack.c.b16 %v628, %v626
    %v655 = vpack.c.b16 %v631, %v629
    %v656 = vpack.c.b16 %v632, %v630
    %v657 = vpack.c.b16 %v635, %v633
    %v658 = vpack.c.b16 %v636, %v634
    %v659 = vpack.c.b16 %v639, %v637
    %v660 = vpack.c.b16 %v640, %v638
    %v661 = vpack.c.b16 %v643, %v641
    %v662 = vpack.c.b16 %v644, %v642
    %v663 = vpack.c.b16 %v647, %v645
    %v664 = vpack.c.b16 %v648, %v646
    %681 = vmatprep.subr.bf16.mxu0 %v650
    %682 = vmatpush1.bf16.msra.mxu0 %v649
    %683 = vmatprep.subr.bf16.mxu0 %v652
    %684 = vmatpush1.bf16.msra.mxu0 %v651
    %685 = vmatprep.subr.bf16.mxu0 %v654
    %686 = vmatpush1.bf16.msra.mxu0 %v653
    %687 = vmatprep.subr.bf16.mxu0 %v656
    %688 = vmatpush1.bf16.msra.mxu0 %v655
    %689 = vmatprep.subr.bf16.mxu0 %v658
    %690 = vmatpush1.bf16.msra.mxu0 %v657
    %691 = vmatprep.subr.bf16.mxu0 %v660
    %692 = vmatpush1.bf16.msra.mxu0 %v659
    %693 = vmatprep.subr.bf16.mxu0 %v662
    %694 = vmatpush1.bf16.msra.mxu0 %v661
    %695 = vmatprep.subr.bf16.mxu0 %v664
    %696 = vmatpush1.bf16.msra.mxu0 %v663
    %697 = vmatprep.subr.bf16.mxu0 0
    %698 = vmatpush1.bf16.msra.mxu0 0
    %699 = vmatprep.subr.bf16.mxu0 0
    %700 = vmatpush1.bf16.msra.mxu0 0
    %701 = vmatprep.subr.bf16.mxu0 0
    %702 = vmatpush1.bf16.msra.mxu0 0
    %703 = vmatprep.subr.bf16.mxu0 0
    %704 = vmatpush1.bf16.msra.mxu0 0
    %705 = vmatprep.subr.bf16.mxu0 0
    %706 = vmatpush1.bf16.msra.mxu0 0
    %707 = vmatprep.subr.bf16.mxu0 0
    %708 = vmatpush1.bf16.msra.mxu0 0
    %709 = vmatprep.subr.bf16.mxu0 0
    %710 = vmatpush1.bf16.msra.mxu0 0
    %711 = vmatprep.subr.bf16.mxu0 0
    %712 = vmatpush1.bf16.msra.mxu0 0
    %713 = vmatprep.mubr.bf16.mxu0 0
    %714 = vmatmul.mubr.bf16.gmra.mrb[0].mxu0 %v572
    %v715 = vpop.f32.mrb[0].mxu0
    %v716 = vadd.f32 %v594, %v715
    %v717 = vpop.f32.mrb[0].mxu0
    %v718 = vadd.f32 %v598, %v717
    %v719 = vpop.f32.mrb[0].mxu0
    %v720 = vadd.f32 %v594, %v719
    %v721 = vpop.f32.mrb[0].mxu0
    %v722 = vadd.f32 %v598, %v721
    %723 = vdwg.mxu0
    %v724 = vmul.f32 %v716, 0.5
    %v725 = vmul.f32 %v718, 0.5
    %v726 = vmul.f32 %v720, 0.5
    %v727 = vmul.f32 %v722, 0.5
    %v728 = vmul.f32 %v716, 0.70710677
    %v729 = vmul.f32 %v718, 0.70710677
    %v730 = vmul.f32 %v720, 0.70710677
    %v731 = vmul.f32 %v722, 0.70710677
    %v732 = verf.f32.pop %v728
    %v733 = verf.f32.pop %v729
    %v734 = verf.f32.pop %v730
    %v735 = verf.f32.pop %v731
    %v736 = vadd.f32 %v732, 1.0
    %v737 = vadd.f32 %v733, 1.0
    %v738 = vadd.f32 %v734, 1.0
    %v739 = vadd.f32 %v735, 1.0
    %v740 = vmul.f32 %v724, %v736
    %v741 = vmul.f32 %v725, %v737
    %v742 = vmul.f32 %v726, %v738
    %v743 = vmul.f32 %v727, %v739
    %v744 = vpack.c.bf16 %v742, %v740
    %v745 = vpack.c.bf16 %v743, %v741
    %746 = vmatprep.subr.bf16.mxu0 %v745
    %747 = vmatpush1.bf16.msra.mxu0 %v744
    %748 = vmatprep.subr.bf16.mxu0 0
    %749 = vmatpush1.bf16.msra.mxu0 0
    %750 = vmatprep.subr.bf16.mxu0 0
    %751 = vmatpush1.bf16.msra.mxu0 0
    %752 = vmatprep.subr.bf16.mxu0 0
    %753 = vmatpush1.bf16.msra.mxu0 0
    %754 = vmatprep.subr.bf16.mxu0 0
    %755 = vmatpush1.bf16.msra.mxu0 0
    %756 = vmatprep.subr.bf16.mxu0 0
    %757 = vmatpush1.bf16.msra.mxu0 0
    %758 = vmatprep.subr.bf16.mxu0 0
    %759 = vmatpush1.bf16.msra.mxu0 0
    %760 = vmatprep.subr.bf16.mxu0 0
    %761 = vmatpush1.bf16.msra.mxu0 0
    %762 = vmatprep.subr.bf16.mxu0 0
    %763 = vmatpush1.bf16.msra.mxu0 0
    %764 = vmatprep.subr.bf16.mxu0 0
    %765 = vmatpush1.bf16.msra.mxu0 0
    %766 = vmatprep.subr.bf16.mxu0 0
    %767 = vmatpush1.bf16.msra.mxu0 0
    %768 = vmatprep.subr.bf16.mxu0 0
    %769 = vmatpush1.bf16.msra.mxu0 0
    %770 = vmatprep.subr.bf16.mxu0 0
    %771 = vmatpush1.bf16.msra.mxu0 0
    %772 = vmatprep.subr.bf16.mxu0 0
    %773 = vmatpush1.bf16.msra.mxu0 0
    %774 = vmatprep.subr.bf16.mxu0 0
    %775 = vmatpush1.bf16.msra.mxu0 0
    %776 = vmatprep.subr.bf16.mxu0 0
    %777 = vmatpush1.bf16.msra.mxu0 0
    %778 = vmatprep.mubr.bf16.mxu0 0
    %779 = vmatmul.mubr.bf16.gmra.mrb[0].mxu0 %v124
    %v780 = vpop.f32.mrb[0].mxu0
    %v781 = vadd.f32 0.0, %v780
    %v782 = vpop.f32.mrb[0].mxu0
    %v783 = vadd.f32 0.0, %v782
    %v784 = vpop.f32.mrb[0].mxu0
    %v785 = vadd.f32 0.0, %v784
    %v786 = vpop.f32.mrb[0].mxu0
    %v787 = vadd.f32 0.0, %v786
    %788 = vdwg.mxu0
    %v789 = vpack.c.bf16 %v785, %v781
    %v790 = vpack.c.bf16 %v787, %v783
    %v791 = vld [vmem:[%s7] sm:$0xff]
    %v792 = vld [vmem:[%s7 + $0x8] sm:$0xff]
    %v793 = vld [vmem:[%s7 + $0x10] sm:$0xff]
    %v794 = vld [vmem:[%s7 + $0x18] sm:$0xff]
    %v795 = vld [vmem:[%s7 + $0x20] sm:$0xff]
    %v796 = vld [vmem:[%s7 + $0x28] sm:$0xff]
    %v797 = vld [vmem:[%s7 + $0x30] sm:$0xff]
    %v798 = vld [vmem:[%s7 + $0x38] sm:$0xff]
    %v799 = vld [vmem:[%s7 + $0x40] sm:$0xff]
    %v800 = vld [vmem:[%s7 + $0x48] sm:$0xff]
    %v801 = vld [vmem:[%s7 + $0x50] sm:$0xff]
    %v802 = vld [vmem:[%s7 + $0x58] sm:$0xff]
    %v803 = vld [vmem:[%s7 + $0x60] sm:$0xff]
    %v804 = vld [vmem:[%s7 + $0x68] sm:$0xff]
    %v805 = vld [vmem:[%s7 + $0x70] sm:$0xff]
    %v806 = vld [vmem:[%s7 + $0x78] sm:$0xff]
    %v807 = vld [vmem:[%s7 + $0x80] sm:$0xff]
    %v808 = vld [vmem:[%s7 + $0x88] sm:$0xff]
    %v809 = vld [vmem:[%s7 + $0x90] sm:$0xff]
    %v810 = vld [vmem:[%s7 + $0x98] sm:$0xff]
    %v811 = vld [vmem:[%s7 + $0xa0] sm:$0xff]
    %v812 = vld [vmem:[%s7 + $0xa8] sm:$0xff]
    %v813 = vld [vmem:[%s7 + $0xb0] sm:$0xff]
    %v814 = vld [vmem:[%s7 + $0xb8] sm:$0xff]
    %v815 = vld [vmem:[%s7 + $0xc0] sm:$0xff]
    %v816 = vld [vmem:[%s7 + $0xc8] sm:$0xff]
    %v817 = vld [vmem:[%s7 + $0xd0] sm:$0xff]
    %v818 = vld [vmem:[%s7 + $0xd8] sm:$0xff]
    %v819 = vld [vmem:[%s7 + $0xe0] sm:$0xff]
    %v820 = vld [vmem:[%s7 + $0xe8] sm:$0xff]
    %v821 = vld [vmem:[%s7 + $0xf0] sm:$0xff]
    %v822 = vld [vmem:[%s7 + $0xf8] sm:$0xff]
    %v855 = vunpack.c.l.b16 %v791
    %v856 = vunpack.c.h.b16 %v791
    %v857 = vunpack.c.l.b16 %v792
    %v858 = vunpack.c.h.b16 %v792
    %v859 = vunpack.c.l.b16 %v793
    %v860 = vunpack.c.h.b16 %v793
    %v861 = vunpack.c.l.b16 %v794
    %v862 = vunpack.c.h.b16 %v794
    %v863 = vunpack.c.l.b16 %v795
    %v864 = vunpack.c.h.b16 %v795
    %v865 = vunpack.c.l.b16 %v796
    %v866 = vunpack.c.h.b16 %v796
    %v867 = vunpack.c.l.b16 %v797
    %v868 = vunpack.c.h.b16 %v797
    %v869 = vunpack.c.l.b16 %v798
    %v870 = vunpack.c.h.b16 %v798
    %v871 = vunpack.c.l.b16 %v799
    %v872 = vunpack.c.h.b16 %v799
    %v873 = vunpack.c.l.b16 %v800
    %v874 = vunpack.c.h.b16 %v800
    %v875 = vunpack.c.l.b16 %v801
    %v876 = vunpack.c.h.b16 %v801
    %v877 = vunpack.c.l.b16 %v802
    %v878 = vunpack.c.h.b16 %v802
    %v879 = vunpack.c.l.b16 %v803
    %v880 = vunpack.c.h.b16 %v803
    %v881 = vunpack.c.l.b16 %v804
    %v882 = vunpack.c.h.b16 %v804
    %v883 = vunpack.c.l.b16 %v805
    %v884 = vunpack.c.h.b16 %v805
    %v885 = vunpack.c.l.b16 %v806
    %v886 = vunpack.c.h.b16 %v806
    %v887 = vunpack.c.l.b16 %v807
    %v888 = vunpack.c.h.b16 %v807
    %v889 = vunpack.c.l.b16 %v808
    %v890 = vunpack.c.h.b16 %v808
    %v891 = vunpack.c.l.b16 %v809
    %v892 = vunpack.c.h.b16 %v809
    %v893 = vunpack.c.l.b16 %v810
    %v894 = vunpack.c.h.b16 %v810
    %v895 = vunpack.c.l.b16 %v811
    %v896 = vunpack.c.h.b16 %v811
    %v897 = vunpack.c.l.b16 %v812
    %v898 = vunpack.c.h.b16 %v812
    %v899 = vunpack.c.l.b16 %v813
    %v900 = vunpack.c.h.b16 %v813
    %v901 = vunpack.c.l.b16 %v814
    %v902 = vunpack.c.h.b16 %v814
    %v903 = vunpack.c.l.b16 %v815
    %v904 = vunpack.c.h.b16 %v815
    %v905 = vunpack.c.l.b16 %v816
    %v906 = vunpack.c.h.b16 %v816
    %v907 = vunpack.c.l.b16 %v817
    %v908 = vunpack.c.h.b16 %v817
    %v909 = vunpack.c.l.b16 %v818
    %v910 = vunpack.c.h.b16 %v818
    %v911 = vunpack.c.l.b16 %v819
    %v912 = vunpack.c.h.b16 %v819
    %v913 = vunpack.c.l.b16 %v820
    %v914 = vunpack.c.h.b16 %v820
    %v915 = vunpack.c.l.b16 %v821
    %v916 = vunpack.c.h.b16 %v821
    %v917 = vunpack.c.l.b16 %v822
    %v918 = vunpack.c.h.b16 %v822
    %v919 = vpack.c.b16 %v857, %v855
    %v920 = vpack.c.b16 %v858, %v856
    %v921 = vpack.c.b16 %v861, %v859
    %v922 = vpack.c.b16 %v862, %v860
    %v923 = vpack.c.b16 %v865, %v863
    %v924 = vpack.c.b16 %v866, %v864
    %v925 = vpack.c.b16 %v869, %v867
    %v926 = vpack.c.b16 %v870, %v868
    %v927 = vpack.c.b16 %v873, %v871
    %v928 = vpack.c.b16 %v874, %v872
    %v929 = vpack.c.b16 %v877, %v875
    %v930 = vpack.c.b16 %v878, %v876
    %v931 = vpack.c.b16 %v881, %v879
    %v932 = vpack.c.b16 %v882, %v880
    %v933 = vpack.c.b16 %v885, %v883
    %v934 = vpack.c.b16 %v886, %v884
    %v935 = vpack.c.b16 %v889, %v887
    %v936 = vpack.c.b16 %v890, %v888
    %v937 = vpack.c.b16 %v893, %v891
    %v938 = vpack.c.b16 %v894, %v892
    %v939 = vpack.c.b16 %v897, %v895
    %v940 = vpack.c.b16 %v898, %v896
    %v941 = vpack.c.b16 %v901, %v899
    %v942 = vpack.c.b16 %v902, %v900
    %v943 = vpack.c.b16 %v905, %v903
    %v944 = vpack.c.b16 %v906, %v904
    %v945 = vpack.c.b16 %v909, %v907
    %v946 = vpack.c.b16 %v910, %v908
    %v947 = vpack.c.b16 %v913, %v911
    %v948 = vpack.c.b16 %v914, %v912
    %v949 = vpack.c.b16 %v917, %v915
    %v950 = vpack.c.b16 %v918, %v916
    %983 = vmatprep.subr.bf16.mxu0 %v920
    %984 = vmatpush1.bf16.msra.mxu0 %v919
    %985 = vmatprep.subr.bf16.mxu0 %v922
    %986 = vmatpush1.bf16.msra.mxu0 %v921
    %987 = vmatprep.subr.bf16.mxu0 %v924
    %988 = vmatpush1.bf16.msra.mxu0 %v923
    %989 = vmatprep.subr.bf16.mxu0 %v926
    %990 = vmatpush1.bf16.msra.mxu0 %v925
    %991 = vmatprep.subr.bf16.mxu0 %v928
    %992 = vmatpush1.bf16.msra.mxu0 %v927
    %993 = vmatprep.subr.bf16.mxu0 %v930
    %994 = vmatpush1.bf16.msra.mxu0 %v929
    %995 = vmatprep.subr.bf16.mxu0 %v932
    %996 = vmatpush1.bf16.msra.mxu0 %v931
    %997 = vmatprep.subr.bf16.mxu0 %v934
    %998 = vmatpush1.bf16.msra.mxu0 %v933
    %999 = vmatprep.subr.bf16.mxu0 %v936
    %1000 = vmatpush1.bf16.msra.mxu0 %v935
    %1001 = vmatprep.subr.bf16.mxu0 %v938
    %1002 = vmatpush1.bf16.msra.mxu0 %v937
    %1003 = vmatprep.subr.bf16.mxu0 %v940
    %1004 = vmatpush1.bf16.msra.mxu0 %v939
    %1005 = vmatprep.subr.bf16.mxu0 %v942
    %1006 = vmatpush1.bf16.msra.mxu0 %v941
    %1007 = vmatprep.subr.bf16.mxu0 %v944
    %1008 = vmatpush1.bf16.msra.mxu0 %v943
    %1009 = vmatprep.subr.bf16.mxu0 %v946
    %1010 = vmatpush1.bf16.msra.mxu0 %v945
    %1011 = vmatprep.subr.bf16.mxu0 %v948
    %1012 = vmatpush1.bf16.msra.mxu0 %v947
    %1013 = vmatprep.subr.bf16.mxu0 %v950
    %1014 = vmatpush1.bf16.msra.mxu0 %v949
    %1015 = vmatprep.mubr.bf16.mxu0 %v790
    %1016 = vmatmul.mubr.bf16.gmra.mrb[0].mxu0 %v789
    %v1017 = vpop.f32.mrb[0].mxu0
    %v1018 = vadd.f32 0.0, %v1017
    %v1019 = vpop.f32.mrb[0].mxu0
    %v1020 = vadd.f32 0.0, %v1019
    %v1021 = vpop.f32.mrb[0].mxu0
    %v1022 = vadd.f32 0.0, %v1021
    %v1023 = vpop.f32.mrb[0].mxu0
    %v1024 = vadd.f32 0.0, %v1023
    %1025 = vdwg.mxu0
    %v1026 = vld [vmem:[%s14] sm:$0x3]
    %v1028 = vlaneseq
    %v1029 = vshrl.u32 %v1028, 7
    %v1030 = vsub.s32 0, %v1029
    %v1031 = vrot.slane %v1026, %v1030
    %v1032 = vlaneseq
    %v1033 = vshrl.u32 %v1032, 7
    %v1034 = vsub.s32 1, %v1033
    %v1035 = vrot.slane %v1026, %v1034
    %v1038 = vmul.f32 %v1018, %v1031
    %v1039 = vmul.f32 %v1020, %v1035
    %v1040 = vmul.f32 %v1022, %v1031
    %v1041 = vmul.f32 %v1024, %v1035
    %v1042 = vld [vmem:[%s15] sm:$0x3]
    %v1044 = vlaneseq
    %v1045 = vshrl.u32 %v1044, 7
    %v1046 = vsub.s32 0, %v1045
    %v1047 = vrot.slane %v1042, %v1046
    %v1048 = vlaneseq
    %v1049 = vshrl.u32 %v1048, 7
    %v1050 = vsub.s32 1, %v1049
    %v1051 = vrot.slane %v1042, %v1050
    %v1054 = vadd.f32 %v1038, %v1047
    %v1055 = vadd.f32 %v1039, %v1051
    %v1056 = vadd.f32 %v1040, %v1047
    %v1057 = vadd.f32 %v1041, %v1051
    %v1058 = vmul.f32 %v1054, 0.5
    %v1059 = vmul.f32 %v1055, 0.5
    %v1060 = vmul.f32 %v1056, 0.5
    %v1061 = vmul.f32 %v1057, 0.5
    %v1062 = vmul.f32 %v1054, 0.70710677
    %v1063 = vmul.f32 %v1055, 0.70710677
    %v1064 = vmul.f32 %v1056, 0.70710677
    %v1065 = vmul.f32 %v1057, 0.70710677
    %v1066 = verf.f32.pop %v1062
    %v1067 = verf.f32.pop %v1063
    %v1068 = verf.f32.pop %v1064
    %v1069 = verf.f32.pop %v1065
    %v1070 = vadd.f32 %v1066, 1.0
    %v1071 = vadd.f32 %v1067, 1.0
    %v1072 = vadd.f32 %v1068, 1.0
    %v1073 = vadd.f32 %v1069, 1.0
    %v1074 = vmul.f32 %v1058, %v1070
    %v1075 = vmul.f32 %v1059, %v1071
    %v1076 = vmul.f32 %v1060, %v1072
    %v1077 = vmul.f32 %v1061, %v1073
    %v1078 = vld [vmem:[%s2] sm:$0xff]
    %v1079 = vld [vmem:[%s2 + $0x8] sm:$0xff]
    %v1080 = vlaneseq
    %v1081 = vshrl.u32 %v1080, 7
    %v1082 = vsub.s32 0, %v1081
    %v1083 = vrot.slane %v1078, %v1082
    %1085 = vbcast.lane.b32.xlu0 %v1083, 256
    %v1086 = vpop.permute.xlu0 %1085
    %v1087 = vlaneseq
    %v1088 = vshrl.u32 %v1087, 7
    %v1089 = vsub.s32 1, %v1088
    %v1090 = vrot.slane %v1078, %v1089
    %1092 = vbcast.lane.b32.xlu0 %v1090, 256
    %v1093 = vpop.permute.xlu0 %1092
    %v1094 = vlaneseq
    %v1095 = vshrl.u32 %v1094, 7
    %v1096 = vsub.s32 2, %v1095
    %v1097 = vrot.slane %v1078, %v1096
    %1099 = vbcast.lane.b32.xlu0 %v1097, 256
    %v1100 = vpop.permute.xlu0 %1099
    %v1101 = vlaneseq
    %v1102 = vshrl.u32 %v1101, 7
    %v1103 = vsub.s32 3, %v1102
    %v1104 = vrot.slane %v1078, %v1103
    %1106 = vbcast.lane.b32.xlu0 %v1104, 256
    %v1107 = vpop.permute.xlu0 %1106
    %v1108 = vlaneseq
    %v1109 = vshrl.u32 %v1108, 7
    %v1110 = vsub.s32 4, %v1109
    %v1111 = vrot.slane %v1078, %v1110
    %1113 = vbcast.lane.b32.xlu0 %v1111, 256
    %v1114 = vpop.permute.xlu0 %1113
    %v1115 = vlaneseq
    %v1116 = vshrl.u32 %v1115, 7
    %v1117 = vsub.s32 5, %v1116
    %v1118 = vrot.slane %v1078, %v1117
    %1120 = vbcast.lane.b32.xlu0 %v1118, 256
    %v1121 = vpop.permute.xlu0 %1120
    %v1122 = vlaneseq
    %v1123 = vshrl.u32 %v1122, 7
    %v1124 = vsub.s32 6, %v1123
    %v1125 = vrot.slane %v1078, %v1124
    %1127 = vbcast.lane.b32.xlu0 %v1125, 256
    %v1128 = vpop.permute.xlu0 %1127
    %v1129 = vlaneseq
    %v1130 = vshrl.u32 %v1129, 7
    %v1131 = vsub.s32 7, %v1130
    %v1132 = vrot.slane %v1078, %v1131
    %1134 = vbcast.lane.b32.xlu0 %v1132, 256
    %v1135 = vpop.permute.xlu0 %1134
    %v1136 = vlaneseq
    %v1137 = vshrl.u32 %v1136, 7
    %v1138 = vsub.s32 0, %v1137
    %v1139 = vrot.slane %v1079, %v1138
    %1141 = vbcast.lane.b32.xlu0 %v1139, 256
    %v1142 = vpop.permute.xlu0 %1141
    %v1143 = vlaneseq
    %v1144 = vshrl.u32 %v1143, 7
    %v1145 = vsub.s32 1, %v1144
    %v1146 = vrot.slane %v1079, %v1145
    %1148 = vbcast.lane.b32.xlu0 %v1146, 256
    %v1149 = vpop.permute.xlu0 %1148
    %v1150 = vlaneseq
    %v1151 = vshrl.u32 %v1150, 7
    %v1152 = vsub.s32 2, %v1151
    %v1153 = vrot.slane %v1079, %v1152
    %1155 = vbcast.lane.b32.xlu0 %v1153, 256
    %v1156 = vpop.permute.xlu0 %1155
    %v1157 = vlaneseq
    %v1158 = vshrl.u32 %v1157, 7
    %v1159 = vsub.s32 3, %v1158
    %v1160 = vrot.slane %v1079, %v1159
    %1162 = vbcast.lane.b32.xlu0 %v1160, 256
    %v1163 = vpop.permute.xlu0 %1162
    %v1164 = vlaneseq
    %v1165 = vshrl.u32 %v1164, 7
    %v1166 = vsub.s32 4, %v1165
    %v1167 = vrot.slane %v1079, %v1166
    %1169 = vbcast.lane.b32.xlu0 %v1167, 256
    %v1170 = vpop.permute.xlu0 %1169
    %v1171 = vlaneseq
    %v1172 = vshrl.u32 %v1171, 7
    %v1173 = vsub.s32 5, %v1172
    %v1174 = vrot.slane %v1079, %v1173
    %1176 = vbcast.lane.b32.xlu0 %v1174, 256
    %v1177 = vpop.permute.xlu0 %1176
    %v1178 = vlaneseq
    %v1179 = vshrl.u32 %v1178, 7
    %v1180 = vsub.s32 6, %v1179
    %v1181 = vrot.slane %v1079, %v1180
    %1183 = vbcast.lane.b32.xlu0 %v1181, 256
    %v1184 = vpop.permute.xlu0 %1183
    %v1185 = vlaneseq
    %v1186 = vshrl.u32 %v1185, 7
    %v1187 = vsub.s32 7, %v1186
    %v1188 = vrot.slane %v1079, %v1187
    %1190 = vbcast.lane.b32.xlu0 %v1188, 256
    %v1191 = vpop.permute.xlu0 %1190
    %vm1192 = vcmp.gt.f32.partialorder %v1086, 0.0
    %vm1193 = vcmp.gt.f32.partialorder %v1093, 0.0
    %vm1194 = vcmp.gt.f32.partialorder %v1100, 0.0
    %vm1195 = vcmp.gt.f32.partialorder %v1107, 0.0
    %vm1196 = vcmp.gt.f32.partialorder %v1114, 0.0
    %vm1197 = vcmp.gt.f32.partialorder %v1121, 0.0
    %vm1198 = vcmp.gt.f32.partialorder %v1128, 0.0
    %vm1199 = vcmp.gt.f32.partialorder %v1135, 0.0
    %vm1200 = vcmp.gt.f32.partialorder %v1142, 0.0
    %vm1201 = vcmp.gt.f32.partialorder %v1149, 0.0
    %vm1202 = vcmp.gt.f32.partialorder %v1156, 0.0
    %vm1203 = vcmp.gt.f32.partialorder %v1163, 0.0
    %vm1204 = vcmp.gt.f32.partialorder %v1170, 0.0
    %vm1205 = vcmp.gt.f32.partialorder %v1177, 0.0
    %vm1206 = vcmp.gt.f32.partialorder %v1184, 0.0
    %vm1207 = vcmp.gt.f32.partialorder %v1191, 0.0
    %v1212 = vcombine.low %v1074, %v1075
    %v1213 = vcombine.high %v1074, %v1075
    %v1215 = vunpack.c.l.s4 1966171168
    %v1216 = vunpack.c.0.s8 %v1215
    %v1217 = vlaneseq
    %v1218 = vshrl.u32 %v1217, 7
    %v1219 = vsub.s32 %v1216, %v1218
    %v1220 = vrot.slane %v1212, %v1219
    %v1222 = vunpack.c.l.s4 1966171168
    %v1223 = vunpack.c.0.s8 %v1222
    %v1224 = vlaneseq
    %v1225 = vshrl.u32 %v1224, 7
    %v1226 = vsub.s32 %v1223, %v1225
    %v1227 = vrot.slane %v1213, %v1226
    %v1228 = vcombine.high %v1220, %v1220
    %v1229 = vcombine.high %v1227, %v1227
    %v1231 = vunpack.c.l.s4 1966171168
    %v1232 = vunpack.c.0.s8 %v1231
    %v1233 = vlaneseq
    %v1234 = vshrl.u32 %v1233, 7
    %v1235 = vsub.s32 %v1232, %v1234
    %v1236 = vrot.slane %v1220, %v1235
    %v1238 = vunpack.c.l.s4 1966171168
    %v1239 = vunpack.c.0.s8 %v1238
    %v1240 = vlaneseq
    %v1241 = vshrl.u32 %v1240, 7
    %v1242 = vsub.s32 %v1239, %v1241
    %v1243 = vrot.slane %v1227, %v1242
    %v1245 = vunpack.c.l.s4 1966171168
    %v1246 = vunpack.c.0.s8 %v1245
    %v1247 = vlaneseq
    %v1248 = vshrl.u32 %v1247, 7
    %v1249 = vsub.s32 %v1246, %v1248
    %v1250 = vrot.slane %v1228, %v1249
    %v1252 = vunpack.c.l.s4 1966171168
    %v1253 = vunpack.c.0.s8 %v1252
    %v1254 = vlaneseq
    %v1255 = vshrl.u32 %v1254, 7
    %v1256 = vsub.s32 %v1253, %v1255
    %v1257 = vrot.slane %v1229, %v1256
    %v1258 = vcombine.high %v1236, %v1236
    %v1259 = vcombine.high %v1243, %v1243
    %v1260 = vcombine.high %v1250, %v1250
    %v1261 = vcombine.high %v1257, %v1257
    %v1262 = vcombine.low %v1076, %v1077
    %v1263 = vcombine.high %v1076, %v1077
    %v1265 = vunpack.c.l.s4 1966171168
    %v1266 = vunpack.c.0.s8 %v1265
    %v1267 = vlaneseq
    %v1268 = vshrl.u32 %v1267, 7
    %v1269 = vsub.s32 %v1266, %v1268
    %v1270 = vrot.slane %v1262, %v1269
    %v1272 = vunpack.c.l.s4 1966171168
    %v1273 = vunpack.c.0.s8 %v1272
    %v1274 = vlaneseq
    %v1275 = vshrl.u32 %v1274, 7
    %v1276 = vsub.s32 %v1273, %v1275
    %v1277 = vrot.slane %v1263, %v1276
    %v1278 = vcombine.high %v1270, %v1270
    %v1279 = vcombine.high %v1277, %v1277
    %v1281 = vunpack.c.l.s4 1966171168
    %v1282 = vunpack.c.0.s8 %v1281
    %v1283 = vlaneseq
    %v1284 = vshrl.u32 %v1283, 7
    %v1285 = vsub.s32 %v1282, %v1284
    %v1286 = vrot.slane %v1270, %v1285
    %v1288 = vunpack.c.l.s4 1966171168
    %v1289 = vunpack.c.0.s8 %v1288
    %v1290 = vlaneseq
    %v1291 = vshrl.u32 %v1290, 7
    %v1292 = vsub.s32 %v1289, %v1291
    %v1293 = vrot.slane %v1277, %v1292
    %v1295 = vunpack.c.l.s4 1966171168
    %v1296 = vunpack.c.0.s8 %v1295
    %v1297 = vlaneseq
    %v1298 = vshrl.u32 %v1297, 7
    %v1299 = vsub.s32 %v1296, %v1298
    %v1300 = vrot.slane %v1278, %v1299
    %v1302 = vunpack.c.l.s4 1966171168
    %v1303 = vunpack.c.0.s8 %v1302
    %v1304 = vlaneseq
    %v1305 = vshrl.u32 %v1304, 7
    %v1306 = vsub.s32 %v1303, %v1305
    %v1307 = vrot.slane %v1279, %v1306
    %v1308 = vcombine.high %v1286, %v1286
    %v1309 = vcombine.high %v1293, %v1293
    %v1310 = vcombine.high %v1300, %v1300
    %v1311 = vcombine.high %v1307, %v1307
    %v1312 = vsel %vm1192, 1, 0
    %v1313 = vsel %vm1193, 1, 0
    %v1314 = vsel %vm1194, 1, 0
    %v1315 = vsel %vm1195, 1, 0
    %v1316 = vsel %vm1196, 1, 0
    %v1317 = vsel %vm1197, 1, 0
    %v1318 = vsel %vm1198, 1, 0
    %v1319 = vsel %vm1199, 1, 0
    %v1320 = vsel %vm1200, 1, 0
    %v1321 = vsel %vm1201, 1, 0
    %v1322 = vsel %vm1202, 1, 0
    %v1323 = vsel %vm1203, 1, 0
    %v1324 = vsel %vm1204, 1, 0
    %v1325 = vsel %vm1205, 1, 0
    %v1326 = vsel %vm1206, 1, 0
    %v1327 = vsel %vm1207, 1, 0
    %vm1328 = vcmp.eq.s32.totalorder %v1312, 1
    %vm1329 = vcmp.eq.s32.totalorder %v1313, 1
    %vm1330 = vcmp.eq.s32.totalorder %v1314, 1
    %vm1331 = vcmp.eq.s32.totalorder %v1315, 1
    %vm1332 = vcmp.eq.s32.totalorder %v1316, 1
    %vm1333 = vcmp.eq.s32.totalorder %v1317, 1
    %vm1334 = vcmp.eq.s32.totalorder %v1318, 1
    %vm1335 = vcmp.eq.s32.totalorder %v1319, 1
    %vm1336 = vcmp.eq.s32.totalorder %v1320, 1
    %vm1337 = vcmp.eq.s32.totalorder %v1321, 1
    %vm1338 = vcmp.eq.s32.totalorder %v1322, 1
    %vm1339 = vcmp.eq.s32.totalorder %v1323, 1
    %vm1340 = vcmp.eq.s32.totalorder %v1324, 1
    %vm1341 = vcmp.eq.s32.totalorder %v1325, 1
    %vm1342 = vcmp.eq.s32.totalorder %v1326, 1
    %vm1343 = vcmp.eq.s32.totalorder %v1327, 1
    %v1344 = vlaneseq
    %v1345 = vshrl.u32 %v1344, 7
    %v1346 = vsub.s32 0, %v1345
    %v1347 = vrot.slane %v1236, %v1346
    %v1348 = vlaneseq
    %v1349 = vshrl.u32 %v1348, 7
    %v1350 = vsub.s32 1, %v1349
    %v1351 = vrot.slane %v1236, %v1350
    %v1352 = vlaneseq
    %v1353 = vshrl.u32 %v1352, 7
    %v1354 = vsub.s32 0, %v1353
    %v1355 = vrot.slane %v1250, %v1354
    %v1356 = vlaneseq
    %v1357 = vshrl.u32 %v1356, 7
    %v1358 = vsub.s32 1, %v1357
    %v1359 = vrot.slane %v1250, %v1358
    %v1360 = vlaneseq
    %v1361 = vshrl.u32 %v1360, 7
    %v1362 = vsub.s32 0, %v1361
    %v1363 = vrot.slane %v1258, %v1362
    %v1364 = vlaneseq
    %v1365 = vshrl.u32 %v1364, 7
    %v1366 = vsub.s32 1, %v1365
    %v1367 = vrot.slane %v1258, %v1366
    %v1368 = vlaneseq
    %v1369 = vshrl.u32 %v1368, 7
    %v1370 = vsub.s32 0, %v1369
    %v1371 = vrot.slane %v1260, %v1370
    %v1372 = vlaneseq
    %v1373 = vshrl.u32 %v1372, 7
    %v1374 = vsub.s32 1, %v1373
    %v1375 = vrot.slane %v1260, %v1374
    %v1376 = vlaneseq
    %v1377 = vshrl.u32 %v1376, 7
    %v1378 = vsub.s32 0, %v1377
    %v1379 = vrot.slane %v1243, %v1378
    %v1380 = vlaneseq
    %v1381 = vshrl.u32 %v1380, 7
    %v1382 = vsub.s32 1, %v1381
    %v1383 = vrot.slane %v1243, %v1382
    %v1384 = vlaneseq
    %v1385 = vshrl.u32 %v1384, 7
    %v1386 = vsub.s32 0, %v1385
    %v1387 = vrot.slane %v1257, %v1386
    %v1388 = vlaneseq
    %v1389 = vshrl.u32 %v1388, 7
    %v1390 = vsub.s32 1, %v1389
    %v1391 = vrot.slane %v1257, %v1390
    %v1392 = vlaneseq
    %v1393 = vshrl.u32 %v1392, 7
    %v1394 = vsub.s32 0, %v1393
    %v1395 = vrot.slane %v1259, %v1394
    %v1396 = vlaneseq
    %v1397 = vshrl.u32 %v1396, 7
    %v1398 = vsub.s32 1, %v1397
    %v1399 = vrot.slane %v1259, %v1398
    %v1400 = vlaneseq
    %v1401 = vshrl.u32 %v1400, 7
    %v1402 = vsub.s32 0, %v1401
    %v1403 = vrot.slane %v1261, %v1402
    %v1404 = vlaneseq
    %v1405 = vshrl.u32 %v1404, 7
    %v1406 = vsub.s32 1, %v1405
    %v1407 = vrot.slane %v1261, %v1406
    %v1408 = vlaneseq
    %v1409 = vshrl.u32 %v1408, 7
    %v1410 = vsub.s32 0, %v1409
    %v1411 = vrot.slane %v1286, %v1410
    %v1412 = vlaneseq
    %v1413 = vshrl.u32 %v1412, 7
    %v1414 = vsub.s32 1, %v1413
    %v1415 = vrot.slane %v1286, %v1414
    %v1416 = vlaneseq
    %v1417 = vshrl.u32 %v1416, 7
    %v1418 = vsub.s32 0, %v1417
    %v1419 = vrot.slane %v1300, %v1418
    %v1420 = vlaneseq
    %v1421 = vshrl.u32 %v1420, 7
    %v1422 = vsub.s32 1, %v1421
    %v1423 = vrot.slane %v1300, %v1422
    %v1424 = vlaneseq
    %v1425 = vshrl.u32 %v1424, 7
    %v1426 = vsub.s32 0, %v1425
    %v1427 = vrot.slane %v1308, %v1426
    %v1428 = vlaneseq
    %v1429 = vshrl.u32 %v1428, 7
    %v1430 = vsub.s32 1, %v1429
    %v1431 = vrot.slane %v1308, %v1430
    %v1432 = vlaneseq
    %v1433 = vshrl.u32 %v1432, 7
    %v1434 = vsub.s32 0, %v1433
    %v1435 = vrot.slane %v1310, %v1434
    %v1436 = vlaneseq
    %v1437 = vshrl.u32 %v1436, 7
    %v1438 = vsub.s32 1, %v1437
    %v1439 = vrot.slane %v1310, %v1438
    %v1440 = vlaneseq
    %v1441 = vshrl.u32 %v1440, 7
    %v1442 = vsub.s32 0, %v1441
    %v1443 = vrot.slane %v1293, %v1442
    %v1444 = vlaneseq
    %v1445 = vshrl.u32 %v1444, 7
    %v1446 = vsub.s32 1, %v1445
    %v1447 = vrot.slane %v1293, %v1446
    %v1448 = vlaneseq
    %v1449 = vshrl.u32 %v1448, 7
    %v1450 = vsub.s32 0, %v1449
    %v1451 = vrot.slane %v1307, %v1450
    %v1452 = vlaneseq
    %v1453 = vshrl.u32 %v1452, 7
    %v1454 = vsub.s32 1, %v1453
    %v1455 = vrot.slane %v1307, %v1454
    %v1456 = vlaneseq
    %v1457 = vshrl.u32 %v1456, 7
    %v1458 = vsub.s32 0, %v1457
    %v1459 = vrot.slane %v1309, %v1458
    %v1460 = vlaneseq
    %v1461 = vshrl.u32 %v1460, 7
    %v1462 = vsub.s32 1, %v1461
    %v1463 = vrot.slane %v1309, %v1462
    %v1464 = vlaneseq
    %v1465 = vshrl.u32 %v1464, 7
    %v1466 = vsub.s32 0, %v1465
    %v1467 = vrot.slane %v1311, %v1466
    %v1468 = vlaneseq
    %v1469 = vshrl.u32 %v1468, 7
    %v1470 = vsub.s32 1, %v1469
    %v1471 = vrot.slane %v1311, %v1470
    %v1504 = vsel %vm1328, %v1347, -1e+30
    %v1505 = vsel %vm1328, %v1351, -1e+30
    %v1506 = vsel %vm1329, %v1355, -1e+30
    %v1507 = vsel %vm1329, %v1359, -1e+30
    %v1508 = vsel %vm1330, %v1363, -1e+30
    %v1509 = vsel %vm1330, %v1367, -1e+30
    %v1510 = vsel %vm1331, %v1371, -1e+30
    %v1511 = vsel %vm1331, %v1375, -1e+30
    %v1512 = vsel %vm1332, %v1379, -1e+30
    %v1513 = vsel %vm1332, %v1383, -1e+30
    %v1514 = vsel %vm1333, %v1387, -1e+30
    %v1515 = vsel %vm1333, %v1391, -1e+30
    %v1516 = vsel %vm1334, %v1395, -1e+30
    %v1517 = vsel %vm1334, %v1399, -1e+30
    %v1518 = vsel %vm1335, %v1403, -1e+30
    %v1519 = vsel %vm1335, %v1407, -1e+30
    %v1520 = vsel %vm1336, %v1411, -1e+30
    %v1521 = vsel %vm1336, %v1415, -1e+30
    %v1522 = vsel %vm1337, %v1419, -1e+30
    %v1523 = vsel %vm1337, %v1423, -1e+30
    %v1524 = vsel %vm1338, %v1427, -1e+30
    %v1525 = vsel %vm1338, %v1431, -1e+30
    %v1526 = vsel %vm1339, %v1435, -1e+30
    %v1527 = vsel %vm1339, %v1439, -1e+30
    %v1528 = vsel %vm1340, %v1443, -1e+30
    %v1529 = vsel %vm1340, %v1447, -1e+30
    %v1530 = vsel %vm1341, %v1451, -1e+30
    %v1531 = vsel %vm1341, %v1455, -1e+30
    %v1532 = vsel %vm1342, %v1459, -1e+30
    %v1533 = vsel %vm1342, %v1463, -1e+30
    %v1534 = vsel %vm1343, %v1467, -1e+30
    %v1535 = vsel %vm1343, %v1471, -1e+30
    %vm1536 = vcmask 1041408
    %v1537 = vsel %vm1536, %v1504, -inf
    %v1538 = vsel %vm1536, %v1506, -inf
    %v1539 = vsel %vm1536, %v1508, -inf
    %v1540 = vmax.f32 %v1537, %v1539
    %v1541 = vsel %vm1536, %v1510, -inf
    %v1542 = vmax.f32 %v1538, %v1541
    %v1543 = vsel %vm1536, %v1512, -inf
    %v1544 = vmax.f32 %v1540, %v1543
    %v1545 = vsel %vm1536, %v1514, -inf
    %v1546 = vmax.f32 %v1542, %v1545
    %v1547 = vsel %vm1536, %v1516, -inf
    %v1548 = vmax.f32 %v1544, %v1547
    %v1549 = vsel %vm1536, %v1518, -inf
    %v1550 = vmax.f32 %v1546, %v1549
    %v1551 = vsel %vm1536, %v1520, -inf
    %v1552 = vmax.f32 %v1548, %v1551
    %v1553 = vsel %vm1536, %v1522, -inf
    %v1554 = vmax.f32 %v1550, %v1553
    %v1555 = vsel %vm1536, %v1524, -inf
    %v1556 = vmax.f32 %v1552, %v1555
    %v1557 = vsel %vm1536, %v1526, -inf
    %v1558 = vmax.f32 %v1554, %v1557
    %v1559 = vsel %vm1536, %v1528, -inf
    %v1560 = vmax.f32 %v1556, %v1559
    %v1561 = vsel %vm1536, %v1530, -inf
    %v1562 = vmax.f32 %v1558, %v1561
    %v1563 = vsel %vm1536, %v1532, -inf
    %v1564 = vmax.f32 %v1560, %v1563
    %v1565 = vsel %vm1536, %v1534, -inf
    %v1566 = vmax.f32 %v1562, %v1565
    %v1567 = vmax.f32 %v1564, %v1566
    %v1568 = vsel %vm1536, %v1505, -inf
    %v1569 = vsel %vm1536, %v1507, -inf
    %v1570 = vsel %vm1536, %v1509, -inf
    %v1571 = vmax.f32 %v1568, %v1570
    %v1572 = vsel %vm1536, %v1511, -inf
    %v1573 = vmax.f32 %v1569, %v1572
    %v1574 = vsel %vm1536, %v1513, -inf
    %v1575 = vmax.f32 %v1571, %v1574
    %v1576 = vsel %vm1536, %v1515, -inf
    %v1577 = vmax.f32 %v1573, %v1576
    %v1578 = vsel %vm1536, %v1517, -inf
    %v1579 = vmax.f32 %v1575, %v1578
    %v1580 = vsel %vm1536, %v1519, -inf
    %v1581 = vmax.f32 %v1577, %v1580
    %v1582 = vsel %vm1536, %v1521, -inf
    %v1583 = vmax.f32 %v1579, %v1582
    %v1584 = vsel %vm1536, %v1523, -inf
    %v1585 = vmax.f32 %v1581, %v1584
    %v1586 = vsel %vm1536, %v1525, -inf
    %v1587 = vmax.f32 %v1583, %v1586
    %v1588 = vsel %vm1536, %v1527, -inf
    %v1589 = vmax.f32 %v1585, %v1588
    %v1590 = vsel %vm1536, %v1529, -inf
    %v1591 = vmax.f32 %v1587, %v1590
    %v1592 = vsel %vm1536, %v1531, -inf
    %v1593 = vmax.f32 %v1589, %v1592
    %v1594 = vsel %vm1536, %v1533, -inf
    %v1595 = vmax.f32 %v1591, %v1594
    %v1596 = vsel %vm1536, %v1535, -inf
    %v1597 = vmax.f32 %v1593, %v1596
    %v1598 = vmax.f32 %v1595, %v1597
    %v1599 = vld [vmem:[%s16] sm:$0xff]
    %v1600 = vld [vmem:[%s16 + $0x8] sm:$0xff]
    %v1601 = vld [vmem:[%s16 + $0x10] sm:$0xff]
    %v1602 = vld [vmem:[%s16 + $0x18] sm:$0xff]
    %v1603 = vld [vmem:[%s16 + $0x20] sm:$0xff]
    %v1604 = vld [vmem:[%s16 + $0x28] sm:$0xff]
    %v1605 = vld [vmem:[%s16 + $0x30] sm:$0xff]
    %v1606 = vld [vmem:[%s16 + $0x38] sm:$0xff]
    %v1607 = vld [vmem:[%s16 + $0x40] sm:$0xff]
    %v1608 = vld [vmem:[%s16 + $0x48] sm:$0xff]
    %v1609 = vld [vmem:[%s16 + $0x50] sm:$0xff]
    %v1610 = vld [vmem:[%s16 + $0x58] sm:$0xff]
    %v1611 = vld [vmem:[%s16 + $0x60] sm:$0xff]
    %v1612 = vld [vmem:[%s16 + $0x68] sm:$0xff]
    %v1613 = vld [vmem:[%s16 + $0x70] sm:$0xff]
    %v1614 = vld [vmem:[%s16 + $0x78] sm:$0xff]
    %v1615 = vld [vmem:[%s16 + $0x80] sm:$0xff]
    %v1616 = vld [vmem:[%s16 + $0x88] sm:$0xff]
    %v1617 = vld [vmem:[%s16 + $0x90] sm:$0xff]
    %v1618 = vld [vmem:[%s16 + $0x98] sm:$0xff]
    %v1619 = vld [vmem:[%s16 + $0xa0] sm:$0xff]
    %v1620 = vld [vmem:[%s16 + $0xa8] sm:$0xff]
    %v1621 = vld [vmem:[%s16 + $0xb0] sm:$0xff]
    %v1622 = vld [vmem:[%s16 + $0xb8] sm:$0xff]
    %v1623 = vld [vmem:[%s16 + $0xc0] sm:$0xff]
    %v1624 = vld [vmem:[%s16 + $0xc8] sm:$0xff]
    %v1625 = vld [vmem:[%s16 + $0xd0] sm:$0xff]
    %v1626 = vld [vmem:[%s16 + $0xd8] sm:$0xff]
    %v1627 = vld [vmem:[%s16 + $0xe0] sm:$0xff]
    %v1628 = vld [vmem:[%s16 + $0xe8] sm:$0xff]
    %v1629 = vld [vmem:[%s16 + $0xf0] sm:$0xff]
    %v1630 = vld [vmem:[%s16 + $0xf8] sm:$0xff]
    %v1631 = vld [vmem:[%s17] sm:$0x1]
    %v1633 = vlaneseq
    %v1634 = vshrl.u32 %v1633, 7
    %v1635 = vsub.s32 0, %v1634
    %v1636 = vrot.slane %v1631, %v1635
    %1638 = vmatprep.subr.mxu0 0.0
    %1639 = vmatpush1.msra.mxu0 %v1599
    %1640 = vmatprep.subr.mxu0 0.0
    %1641 = vmatpush1.msra.mxu0 %v1600
    %1642 = vmatprep.subr.mxu0 0.0
    %1643 = vmatpush1.msra.mxu0 %v1601
    %1644 = vmatprep.subr.mxu0 0.0
    %1645 = vmatpush1.msra.mxu0 %v1602
    %1646 = vmatprep.subr.mxu0 0.0
    %1647 = vmatpush1.msra.mxu0 %v1603
    %1648 = vmatprep.subr.mxu0 0.0
    %1649 = vmatpush1.msra.mxu0 %v1604
    %1650 = vmatprep.subr.mxu0 0.0
    %1651 = vmatpush1.msra.mxu0 %v1605
    %1652 = vmatprep.subr.mxu0 0.0
    %1653 = vmatpush1.msra.mxu0 %v1606
    %1654 = vmatprep.subr.mxu0 0.0
    %1655 = vmatpush1.msra.mxu0 %v1607
    %1656 = vmatprep.subr.mxu0 0.0
    %1657 = vmatpush1.msra.mxu0 %v1608
    %1658 = vmatprep.subr.mxu0 0.0
    %1659 = vmatpush1.msra.mxu0 %v1609
    %1660 = vmatprep.subr.mxu0 0.0
    %1661 = vmatpush1.msra.mxu0 %v1610
    %1662 = vmatprep.subr.mxu0 0.0
    %1663 = vmatpush1.msra.mxu0 %v1611
    %1664 = vmatprep.subr.mxu0 0.0
    %1665 = vmatpush1.msra.mxu0 %v1612
    %1666 = vmatprep.subr.mxu0 0.0
    %1667 = vmatpush1.msra.mxu0 %v1613
    %1668 = vmatprep.subr.mxu0 0.0
    %1669 = vmatpush1.msra.mxu0 %v1614
    %1670 = vmatprep.subr.mxu0 0.0
    %1671 = vmatpush1.msra.mxu0 %v1615
    %1672 = vmatprep.subr.mxu0 0.0
    %1673 = vmatpush1.msra.mxu0 %v1616
    %1674 = vmatprep.subr.mxu0 0.0
    %1675 = vmatpush1.msra.mxu0 %v1617
    %1676 = vmatprep.subr.mxu0 0.0
    %1677 = vmatpush1.msra.mxu0 %v1618
    %1678 = vmatprep.subr.mxu0 0.0
    %1679 = vmatpush1.msra.mxu0 %v1619
    %1680 = vmatprep.subr.mxu0 0.0
    %1681 = vmatpush1.msra.mxu0 %v1620
    %1682 = vmatprep.subr.mxu0 0.0
    %1683 = vmatpush1.msra.mxu0 %v1621
    %1684 = vmatprep.subr.mxu0 0.0
    %1685 = vmatpush1.msra.mxu0 %v1622
    %1686 = vmatprep.subr.mxu0 0.0
    %1687 = vmatpush1.msra.mxu0 %v1623
    %1688 = vmatprep.subr.mxu0 0.0
    %1689 = vmatpush1.msra.mxu0 %v1624
    %1690 = vmatprep.subr.mxu0 0.0
    %1691 = vmatpush1.msra.mxu0 %v1625
    %1692 = vmatprep.subr.mxu0 0.0
    %1693 = vmatpush1.msra.mxu0 %v1626
    %1694 = vmatprep.subr.mxu0 0.0
    %1695 = vmatpush1.msra.mxu0 %v1627
    %1696 = vmatprep.subr.mxu0 0.0
    %1697 = vmatpush1.msra.mxu0 %v1628
    %1698 = vmatprep.subr.mxu0 0.0
    %1699 = vmatpush1.msra.mxu0 %v1629
    %1700 = vmatprep.subr.mxu0 0.0
    %1701 = vmatpush1.msra.mxu0 %v1630
    %1702 = vmatprep.mubr.f32.mxu0 %v1598
    %1703 = vmatmul.mubr.f32.gmra.mrb[0].mxu0 %v1567
    %v1704 = vpop.f32.mrb[0].mxu0
    %v1705 = vadd.f32 %v1636, %v1704
    %v1706 = vpop.f32.mrb[0].mxu0
    %1707 = vdwg.mxu0
    %vm1708 = vcmask 9216
    %1709 = vst.msk [vmem:[#allocation10] sm:$0x3] %vm1708, %v1705
    // Predicated region
    $region90: #{tpu_custom_call.1} parent=1 // pred_check
      _
    $region91: #{tpu_custom_call.1} parent=1 // pred_check_branch
      %1711 = sbr.rel (0) target = $region93
    $region92: #{tpu_custom_call.1} parent=1 // pred_region
      %s1713 = ssub.s32 32, 32
      %1714 = vsyncadd [#allocation4], %s1713
      %s1716 = sshll.u32 [#allocation10], 4
      %s1717 = int_to_ptr.vmem [resolvable:$true] %s1716
      %1719 = dma.vmem_to_hbm [thread:$0]  %s1717, 32, %s18, [#allocation4]
    $region93: #{tpu_custom_call.1} parent=1 // pred_fallthru
      _
    // Predicated region
    $region94: #{tpu_custom_call.1} parent=1 // pred_check
      _
    $region95: #{tpu_custom_call.1} parent=1 // pred_check_branch
      %1721 = sbr.rel (0) target = $region97
    $region96: #{tpu_custom_call.1} parent=1 // pred_region
      %1722 = dma.done [#allocation4], 32
    $region97: #{tpu_custom_call.1} parent=1 // pred_fallthru
      _
    %1723 = vsyncpa [#allocation3], 1
    %1724 = vsyncpa [#allocation6], 1
    %1725 = vsyncpa [#allocation9], 1
    %1726 = vsyncpa [#allocation4], 1

</llo_original>
